<compile_context>
chip_gen: v7x
topology: tpu7x:2x2x1
jax: 0.10.0
libtpu: 0.0.40
codegen_flags: <defaults>
</compile_context>

<pallas_src>
import functools

import jax
import jax.numpy as jnp
from jax.experimental import pallas as pl
from jax.experimental.pallas import tpu as pltpu

# ---- synthetic Decoder config (small shapes) ----
IM_DIMS = (4, 16, 16)                                    # C, H, W -> prod = 1024
LAYER_DIMS = [(32, 64), (64, 128), (128, 4 * 16 * 16)]   # (in_dim, out_dim) per Linear
EPS = 1e-5
LANE = 128
VMEM_LIMIT_BYTES = 32 * 1024 * 1024   # > v5e's 16 MiB default, <= v7x 64 MiB physical


def _round_up(n, m):
    return ((n + m - 1) // m) * m


def _plan_batch(b):
    """Return (b_pad, tb_stats, tb_apply).

    Batch is padded so every tile divides b_pad and is sublane-aligned.
    tb_apply is capped at 512 (2 MiB f32 out block -> VMEM-safe everywhere);
    tb_stats can be larger since the stats pass has no wide output block.
    """
    if b <= 512:
        b_pad = _round_up(max(b, 8), 8)
        return b_pad, b_pad, b_pad
    b_pad = _round_up(b, 512)
    tb_apply = 512
    if b_pad % 2048 == 0:
        tb_stats = 2048
    elif b_pad % 1024 == 0:
        tb_stats = 1024
    else:
        tb_stats = 512
    return b_pad, tb_stats, tb_apply


# --------------------------------------------------------------------------
# Kernel 1: full-batch BatchNorm statistics (f32), big batch tiles, no output
# activations.  grid = (phase, batch_tile); phase is the slow axis so layer-0
# stats are complete before layer-1 stats start.
# --------------------------------------------------------------------------
def _stats_kernel(x_ref, w0_ref, b0_ref, g0_ref, be0_ref, w1_ref, b1_ref,
                  sums_ref, *, inv_b, b_real):
    p = pl.program_id(0)
    t = pl.program_id(1)
    tb = x_ref.shape[0]

    @pl.when(jnp.logical_and(p == 0, t == 0))
    def _init():
        sums_ref[...] = jnp.zeros_like(sums_ref)

    # Mask out padded batch rows (keeps stats exact for any B).
    rows = jax.lax.broadcasted_iota(jnp.int32, (tb, 1), 0) + t * tb
    valid = rows < b_real                                   # (tb, 1) bool

    x = x_ref[...]                                          # f32 (tb, d_in)
    h0 = jnp.dot(x, w0_ref[...], preferred_element_type=jnp.float32) + b0_ref[...]

    @pl.when(p == 0)
    def _phase0():
        h0m = jnp.where(valid, h0, 0.0)
        sums_ref[0:1, :] += jnp.sum(h0m, axis=0, keepdims=True)
        sums_ref[1:2, :] += jnp.sum(h0m * h0, axis=0, keepdims=True)

    @pl.when(p == 1)
    def _phase1():
        mean0 = sums_ref[0:1, :] * inv_b
        var0 = jnp.maximum(sums_ref[1:2, :] * inv_b - mean0 * mean0, 0.0)
        s0 = g0_ref[...] * jax.lax.rsqrt(var0 + EPS)
        a0 = jnp.maximum((h0 - mean0) * s0 + be0_ref[...], 0.0)
        h1 = jnp.dot(a0, w1_ref[...], preferred_element_type=jnp.float32) + b1_ref[...]
        h1m = jnp.where(valid, h1, 0.0)
        sums_ref[2:3, :] += jnp.sum(h1m, axis=0, keepdims=True)
        sums_ref[3:4, :] += jnp.sum(h1m * h1, axis=0, keepdims=True)


# --------------------------------------------------------------------------
# Kernel 2: apply pass -- BN already folded into the weights, so this is just
# matmul + bias + ReLU.  Batch axis is embarrassingly parallel -> megacore.
# --------------------------------------------------------------------------
def _apply_kernel(x_ref, w0_ref, b0_ref, w1_ref, b1_ref, w2_ref, b2_ref, o_ref):
    x = x_ref[...].astype(jnp.bfloat16)
    a0 = jnp.maximum(
        jnp.dot(x, w0_ref[...], preferred_element_type=jnp.float32) + b0_ref[...], 0.0)
    a1 = jnp.maximum(
        jnp.dot(a0.astype(jnp.bfloat16), w1_ref[...],
                preferred_element_type=jnp.float32) + b1_ref[...], 0.0)
    out = jnp.dot(a1.astype(jnp.bfloat16), w2_ref[...],
                  preferred_element_type=jnp.float32) + b2_ref[...]
    o_ref[...] = out.astype(o_ref.dtype)


def _resident(arr):
    """Weights / biases: constant index map -> stay VMEM-resident (one DMA)."""
    return pl.BlockSpec(arr.shape, lambda *_: (0, 0))


def _run_stats(x_p, w0, b0, g0, be0, w1, b1, *, b_real, tb):
    b_pad, d_in = x_p.shape
    d_h = w0.shape[1]
    n_tiles = b_pad // tb
    flops = 2 * b_pad * (2 * d_in * d_h + d_h * d_h)
    bytes_accessed = (2 * b_pad * d_in * 4
                      + (d_in * d_h + d_h * d_h + 5 * d_h) * 4
                      + 4 * d_h * 4)
    return pl.pallas_call(
        functools.partial(_stats_kernel, inv_b=1.0 / b_real, b_real=b_real),
        out_shape=jax.ShapeDtypeStruct((4, d_h), jnp.float32),
        grid_spec=pltpu.PrefetchScalarGridSpec(
            num_scalar_prefetch=0,
            grid=(2, n_tiles),          # (phase, batch tile); phase is slow axis
            in_specs=[
                pl.BlockSpec((tb, d_in), lambda p, t: (t, 0)),
                _resident(w0), _resident(b0), _resident(g0), _resident(be0),
                _resident(w1), _resident(b1),
            ],
            out_specs=pl.BlockSpec((4, d_h), lambda p, t: (0, 0)),  # accumulator
        ),
        compiler_params=pltpu.CompilerParams(
            # Cross-tile BN reduction + ordered phases -> must stay sequential.
            dimension_semantics=("arbitrary", "arbitrary"),
            vmem_limit_bytes=VMEM_LIMIT_BYTES),
        cost_estimate=pl.CostEstimate(flops=flops, transcendentals=0,
                                      bytes_accessed=bytes_accessed),
    )(x_p, w0, b0, g0, be0, w1, b1)


def _run_apply(x_p, w0f, b0f, w1f, b1f, w2, b2, *, tb, out_dtype):
    b_pad, d_in = x_p.shape
    d_h = w0f.shape[1]
    d_out = w2.shape[1]
    n_tiles = b_pad // tb
    out_bytes = jnp.dtype(out_dtype).itemsize
    flops = 2 * b_pad * (d_in * d_h + d_h * d_h + d_h * d_out)
    bytes_accessed = (b_pad * d_in * 4 + b_pad * d_out * out_bytes
                      + (d_in * d_h + d_h * d_h + d_h * d_out) * 2
                      + (2 * d_h + d_out) * 4)
    return pl.pallas_call(
        _apply_kernel,
        out_shape=jax.ShapeDtypeStruct((b_pad, d_out), out_dtype),
        grid_spec=pltpu.PrefetchScalarGridSpec(
            num_scalar_prefetch=0,
            grid=(n_tiles,),
            in_specs=[
                pl.BlockSpec((tb, d_in), lambda t: (t, 0)),
                _resident(w0f), _resident(b0f), _resident(w1f), _resident(b1f),
                _resident(w2), _resident(b2),
            ],
            out_specs=pl.BlockSpec((tb, d_out), lambda t: (t, 0)),  # lane-dense 1024
        ),
        compiler_params=pltpu.CompilerParams(
            # Independent batch tiles -> megacore-shard on v7x's 2 TensorCores.
            dimension_semantics=("parallel",),
            vmem_limit_bytes=VMEM_LIMIT_BYTES),
        cost_estimate=pl.CostEstimate(flops=flops, transcendentals=0,
                                      bytes_accessed=bytes_accessed),
    )(x_p, w0f, b0f, w1f, b1f, w2, b2)


# --------------------------------------------------------------------------
# Parameters
# --------------------------------------------------------------------------
def init_params(key):
    """Deterministic params mimicking PyTorch Linear/BatchNorm1d defaults.
    Linear weights stored pre-transposed as (in, out)."""
    params = []
    for li, (din, dout) in enumerate(LAYER_DIMS):
        kw, kb = jax.random.split(jax.random.fold_in(key, li))
        bound = 1.0 / (din ** 0.5)
        wT = jax.random.uniform(kw, (din, dout), jnp.float32, -bound, bound)
        b = jax.random.uniform(kb, (1, dout), jnp.float32, -bound, bound)
        params.append((wT, b))
    bn = []
    for (_, dout) in LAYER_DIMS[:-1]:
        bn.append((jnp.ones((1, dout), jnp.float32),
                   jnp.zeros((1, dout), jnp.float32)))
    return params, bn


def prepare_params(params, bn):
    """One-time prep: pad the 64-wide hidden layer to 128 lanes.  Padded h0
    columns are exactly 0 -> BN(0)=0 -> ReLU 0, and padded W1 rows are 0, so
    the padding is numerically inert.  W0/W1 kept f32 (needed for the f32
    stats pass and the BN fold); W2 pre-cast to bf16 for the MXU."""
    (w0, b0), (w1, b1), (w2, b2) = params
    (g0, be0), (g1, be1) = bn
    h0_pad = _round_up(w0.shape[1], LANE)        # 64 -> 128
    pc = h0_pad - w0.shape[1]
    w0p = jnp.pad(w0, ((0, 0), (0, pc)))
    b0p = jnp.pad(b0, ((0, 0), (0, pc)))
    g0p = jnp.pad(g0, ((0, 0), (0, pc)), constant_values=1.0)
    be0p = jnp.pad(be0, ((0, 0), (0, pc)))
    w1p = jnp.pad(w1, ((0, pc), (0, 0)))
    return (w0p, b0p, g0p, be0p, w1p, b1, g1, be1,
            w2.astype(jnp.bfloat16), b2)


@functools.partial(jax.jit, static_argnames=("out_dtype",))
def decoder_forward(x, prepped, out_dtype=jnp.float32):
    (w0, b0, g0, be0, w1, b1, g1, be1, w2, b2) = prepped
    B, d_in = x.shape

    b_pad, tb_stats, tb_apply = _plan_batch(B)
    x_p = jnp.pad(x, ((0, b_pad - B), (0, 0))) if b_pad != B else x

    # Pass 1: full-batch BN statistics (big tiles, f32, masked padded rows).
    sums = _run_stats(x_p, w0, b0, g0, be0, w1, b1, b_real=B, tb=tb_stats)

    # Glue: fold BN scale/shift into the adjacent Linear (tiny tensors).
    inv_b = 1.0 / B
    mean0 = sums[0:1, :] * inv_b
    var0 = jnp.maximum(sums[1:2, :] * inv_b - mean0 * mean0, 0.0)
    s0 = g0 * jax.lax.rsqrt(var0 + EPS)
    w0f = (w0 * s0).astype(jnp.bfloat16)
    b0f = (b0 - mean0) * s0 + be0

    mean1 = sums[2:3, :] * inv_b
    var1 = jnp.maximum(sums[3:4, :] * inv_b - mean1 * mean1, 0.0)
    s1 = g1 * jax.lax.rsqrt(var1 + EPS)
    w1f = (w1 * s1).astype(jnp.bfloat16)
    b1f = (b1 - mean1) * s1 + be1

    # Pass 2: matmul+bias+ReLU chain, batch-parallel (megacore on v7x).
    flat = _run_apply(x_p, w0f, b0f, w1f, b1f, w2, b2,
                      tb=tb_apply, out_dtype=out_dtype)

    # Decoder.forward: .view(-1, *im_dims)  (pure reshape -> plain JAX glue)
    return flat[:B].reshape(-1, *IM_DIMS)


if __name__ == "__main__":
    key = jax.random.PRNGKey(0)
    kx, kp = jax.random.split(key)

    B = 2
    x = jax.random.normal(kx, (B, LAYER_DIMS[0][0]), jnp.float32)   # (2, 32)

    params, bn = init_params(kp)
    prepped = prepare_params(params, bn)

    # Default f32 output (PyTorch fidelity).
    y = decoder_forward(x, prepped)
    jax.block_until_ready(y)
    assert y.shape == (B, *IM_DIMS), y.shape
    assert y.dtype == jnp.float32
    assert bool(jnp.all(jnp.isfinite(y)))

    # bf16 output variant (halves HBM traffic on the store-bound apply pass).
    y16 = decoder_forward(x, prepped, out_dtype=jnp.bfloat16)
    jax.block_until_ready(y16)
    assert y16.shape == (B, *IM_DIMS), y16.shape
    assert y16.dtype == jnp.bfloat16

    print("KERNEL_OK")
</pallas_src>

<mosaic_0001>
module attributes {stable_mosaic.version = 11 : i64} {
  func.func @_stats_kernel(%arg0: i32, %arg1: i32, %arg2: memref<8x32xf32, #tpu.memory_space<vmem>>, %arg3: memref<32x128xf32, #tpu.memory_space<vmem>>, %arg4: memref<1x128xf32, #tpu.memory_space<vmem>>, %arg5: memref<1x128xf32, #tpu.memory_space<vmem>>, %arg6: memref<1x128xf32, #tpu.memory_space<vmem>>, %arg7: memref<128x128xf32, #tpu.memory_space<vmem>>, %arg8: memref<1x128xf32, #tpu.memory_space<vmem>>, %arg9: memref<4x128xf32, #tpu.memory_space<vmem>>) attributes {dimension_semantics = [#tpu.dimension_semantics<arbitrary>, #tpu.dimension_semantics<arbitrary>], iteration_bounds = array<i64: 2, 1>, scalar_prefetch = 0 : i64, scratch_operands = 0 : i64, tpu.core_type = #tpu.core_type<tc>, window_params = [{transform_indices = @transform_0, window_bounds = array<i64: 8, 32>}, {pipeline_mode = #tpu.pipeline_mode<synchronous>, transform_indices = @transform_1, window_bounds = array<i64: 32, 128>}, {pipeline_mode = #tpu.pipeline_mode<synchronous>, transform_indices = @transform_2, window_bounds = array<i64: 1, 128>}, {pipeline_mode = #tpu.pipeline_mode<synchronous>, transform_indices = @transform_3, window_bounds = array<i64: 1, 128>}, {pipeline_mode = #tpu.pipeline_mode<synchronous>, transform_indices = @transform_4, window_bounds = array<i64: 1, 128>}, {pipeline_mode = #tpu.pipeline_mode<synchronous>, transform_indices = @transform_5, window_bounds = array<i64: 128, 128>}, {pipeline_mode = #tpu.pipeline_mode<synchronous>, transform_indices = @transform_6, window_bounds = array<i64: 1, 128>}, {pipeline_mode = #tpu.pipeline_mode<synchronous>, transform_indices = @transform_7, window_bounds = array<i64: 4, 128>}]} {
    %c0_i32 = arith.constant 0 : i32
    %0 = arith.cmpi eq, %arg0, %c0_i32 : i32
    %c0_i32_0 = arith.constant 0 : i32
    %1 = arith.cmpi eq, %arg1, %c0_i32_0 : i32
    %2 = arith.andi %0, %1 : i1
    %3 = arith.extui %2 : i1 to i32
    %c0_i32_1 = arith.constant 0 : i32
    %4 = arith.cmpi ne, %3, %c0_i32_1 : i32
    scf.if %4 {
      %cst_10 = arith.constant 0.000000e+00 : f32
      %23 = vector.broadcast %cst_10 : f32 to vector<4x128xf32>
      %c0_11 = arith.constant 0 : index
      %c0_12 = arith.constant 0 : index
      %24 = vector.load %arg9[%c0_11, %c0_12] : memref<4x128xf32, #tpu.memory_space<vmem>>, vector<4x128xf32>
      tpu.vector_store %arg9[%c0_11, %c0_12], %23 {strides = array<i32>} : memref<4x128xf32, #tpu.memory_space<vmem>>, vector<4x128xf32>,
    } else {
    }
    %5 = tpu.iota {dimensions = array<i32: 0>} : vector<8x1xi32>
    %c8_i32 = arith.constant 8 : i32
    %6 = arith.muli %arg1, %c8_i32 : i32
    %7 = vector.broadcast %6 : i32 to vector<8x1xi32>
    %8 = arith.addi %5, %7 : vector<8x1xi32>
    %c2_i32 = arith.constant 2 : i32
    %9 = vector.broadcast %c2_i32 : i32 to vector<8x1xi32>
    %10 = arith.cmpi slt, %8, %9 : vector<8x1xi32>
    %c0 = arith.constant 0 : index
    %c0_2 = arith.constant 0 : index
    %11 = vector.load %arg2[%c0, %c0_2] : memref<8x32xf32, #tpu.memory_space<vmem>>, vector<8x32xf32>
    %c0_3 = arith.constant 0 : index
    %c0_4 = arith.constant 0 : index
    %12 = vector.load %arg3[%c0_3, %c0_4] : memref<32x128xf32, #tpu.memory_space<vmem>>, vector<32x128xf32>
    %cst = arith.constant dense<0.000000e+00> : vector<8x128xf32>
    %13 = tpu.matmul %11, %12, %cst {dimension_numbers = #tpu.dot_dimension_numbers<[1], [0], [0], [1], [0, 0, 1, 1], [], []>} : vector<8x32xf32>, vector<32x128xf32>, vector<8x128xf32> -> vector<8x128xf32>
    %c0_5 = arith.constant 0 : index
    %c0_6 = arith.constant 0 : index
    %14 = vector.load %arg4[%c0_5, %c0_6] : memref<1x128xf32, #tpu.memory_space<vmem>>, vector<1x128xf32>
    %15 = vector.broadcast %14 : vector<1x128xf32> to vector<8x128xf32>
    %16 = arith.addf %13, %15 : vector<8x128xf32>
    %c0_i32_7 = arith.constant 0 : i32
    %17 = arith.cmpi eq, %arg0, %c0_i32_7 : i32
    %18 = arith.extui %17 : i1 to i32
    %c0_i32_8 = arith.constant 0 : i32
    %19 = arith.cmpi ne, %18, %c0_i32_8 : i32
    scf.if %19 {
      %cst_10 = arith.constant 0.000000e+00 : f32
      %23 = vector.shape_cast %10 : vector<8x1xi1> to vector<8x1xi1>
      %24 = vector.broadcast %23 : vector<8x1xi1> to vector<8x128xi1>
      %25 = vector.broadcast %cst_10 : f32 to vector<8x128xf32>
      %26 = arith.select %24, %16, %25 : vector<8x128xi1>, vector<8x128xf32>
      %c0_11 = arith.constant 0 : index
      %c0_12 = arith.constant 0 : index
      %27 = vector.load %arg9[%c0_11, %c0_12] : memref<4x128xf32, #tpu.memory_space<vmem>>, vector<1x128xf32>
      %cst_13 = arith.constant dense<0.000000e+00> : vector<128xf32>
      %28 = vector.multi_reduction <add>, %26, %cst_13 [0] : vector<8x128xf32> to vector<128xf32>
      %29 = vector.shape_cast %28 : vector<128xf32> to vector<1x128xf32>
      %30 = arith.addf %27, %29 : vector<1x128xf32>
      %c0_14 = arith.constant 0 : index
      %c0_15 = arith.constant 0 : index
      %31 = vector.load %arg9[%c0_14, %c0_15] : memref<4x128xf32, #tpu.memory_space<vmem>>, vector<1x128xf32>
      tpu.vector_store %arg9[%c0_14, %c0_15], %30 {strides = array<i32>} : memref<4x128xf32, #tpu.memory_space<vmem>>, vector<1x128xf32>,
      %c1 = arith.constant 1 : index
      %c0_16 = arith.constant 0 : index
      %32 = vector.load %arg9[%c1, %c0_16] : memref<4x128xf32, #tpu.memory_space<vmem>>, vector<1x128xf32>
      %33 = arith.mulf %26, %16 : vector<8x128xf32>
      %cst_17 = arith.constant dense<0.000000e+00> : vector<128xf32>
      %34 = vector.multi_reduction <add>, %33, %cst_17 [0] : vector<8x128xf32> to vector<128xf32>
      %35 = vector.shape_cast %34 : vector<128xf32> to vector<1x128xf32>
      %36 = arith.addf %32, %35 : vector<1x128xf32>
      %c1_18 = arith.constant 1 : index
      %c0_19 = arith.constant 0 : index
      %37 = vector.load %arg9[%c1_18, %c0_19] : memref<4x128xf32, #tpu.memory_space<vmem>>, vector<1x128xf32>
      tpu.vector_store %arg9[%c1_18, %c0_19], %36 {strides = array<i32>} : memref<4x128xf32, #tpu.memory_space<vmem>>, vector<1x128xf32>,
    } else {
    }
    %c1_i32 = arith.constant 1 : i32
    %20 = arith.cmpi eq, %arg0, %c1_i32 : i32
    %21 = arith.extui %20 : i1 to i32
    %c0_i32_9 = arith.constant 0 : i32
    %22 = arith.cmpi ne, %21, %c0_i32_9 : i32
    scf.if %22 {
      %c0_10 = arith.constant 0 : index
      %c0_11 = arith.constant 0 : index
      %23 = vector.load %arg9[%c0_10, %c0_11] : memref<4x128xf32, #tpu.memory_space<vmem>>, vector<1x128xf32>
      %cst_12 = arith.constant 5.000000e-01 : f32
      %24 = vector.broadcast %cst_12 : f32 to vector<1x128xf32>
      %25 = arith.mulf %23, %24 : vector<1x128xf32>
      %c1 = arith.constant 1 : index
      %c0_13 = arith.constant 0 : index
      %26 = vector.load %arg9[%c1, %c0_13] : memref<4x128xf32, #tpu.memory_space<vmem>>, vector<1x128xf32>
      %cst_14 = arith.constant 5.000000e-01 : f32
      %27 = vector.broadcast %cst_14 : f32 to vector<1x128xf32>
      %28 = arith.mulf %26, %27 : vector<1x128xf32>
      %29 = arith.mulf %25, %25 : vector<1x128xf32>
      %30 = arith.subf %28, %29 : vector<1x128xf32>
      %cst_15 = arith.constant 0.000000e+00 : f32
      %31 = vector.broadcast %cst_15 : f32 to vector<1x128xf32>
      %32 = arith.maximumf %30, %31 : vector<1x128xf32>
      %c0_16 = arith.constant 0 : index
      %c0_17 = arith.constant 0 : index
      %33 = vector.load %arg5[%c0_16, %c0_17] : memref<1x128xf32, #tpu.memory_space<vmem>>, vector<1x128xf32>
      %cst_18 = arith.constant 9.99999974E-6 : f32
      %34 = vector.broadcast %cst_18 : f32 to vector<1x128xf32>
      %35 = arith.addf %32, %34 : vector<1x128xf32>
      %36 = math.rsqrt %35 : vector<1x128xf32>
      %37 = arith.mulf %33, %36 : vector<1x128xf32>
      %38 = vector.broadcast %25 : vector<1x128xf32> to vector<8x128xf32>
      %39 = arith.subf %16, %38 : vector<8x128xf32>
      %40 = vector.broadcast %37 : vector<1x128xf32> to vector<8x128xf32>
      %41 = arith.mulf %39, %40 : vector<8x128xf32>
      %c0_19 = arith.constant 0 : index
      %c0_20 = arith.constant 0 : index
      %42 = vector.load %arg6[%c0_19, %c0_20] : memref<1x128xf32, #tpu.memory_space<vmem>>, vector<1x128xf32>
      %43 = vector.broadcast %42 : vector<1x128xf32> to vector<8x128xf32>
      %44 = arith.addf %41, %43 : vector<8x128xf32>
      %cst_21 = arith.constant 0.000000e+00 : f32
      %45 = vector.broadcast %cst_21 : f32 to vector<8x128xf32>
      %46 = arith.maximumf %44, %45 : vector<8x128xf32>
      %c0_22 = arith.constant 0 : index
      %c0_23 = arith.constant 0 : index
      %47 = vector.load %arg7[%c0_22, %c0_23] : memref<128x128xf32, #tpu.memory_space<vmem>>, vector<128x128xf32>
      %cst_24 = arith.constant dense<0.000000e+00> : vector<8x128xf32>
      %48 = tpu.matmul %46, %47, %cst_24 {dimension_numbers = #tpu.dot_dimension_numbers<[1], [0], [0], [1], [0, 0, 1, 1], [], []>} : vector<8x128xf32>, vector<128x128xf32>, vector<8x128xf32> -> vector<8x128xf32>
      %c0_25 = arith.constant 0 : index
      %c0_26 = arith.constant 0 : index
      %49 = vector.load %arg8[%c0_25, %c0_26] : memref<1x128xf32, #tpu.memory_space<vmem>>, vector<1x128xf32>
      %50 = vector.broadcast %49 : vector<1x128xf32> to vector<8x128xf32>
      %51 = arith.addf %48, %50 : vector<8x128xf32>
      %cst_27 = arith.constant 0.000000e+00 : f32
      %52 = vector.shape_cast %10 : vector<8x1xi1> to vector<8x1xi1>
      %53 = vector.broadcast %52 : vector<8x1xi1> to vector<8x128xi1>
      %54 = vector.broadcast %cst_27 : f32 to vector<8x128xf32>
      %55 = arith.select %53, %51, %54 : vector<8x128xi1>, vector<8x128xf32>
      %c2 = arith.constant 2 : index
      %c0_28 = arith.constant 0 : index
      %56 = vector.load %arg9[%c2, %c0_28] : memref<4x128xf32, #tpu.memory_space<vmem>>, vector<1x128xf32>
      %cst_29 = arith.constant dense<0.000000e+00> : vector<128xf32>
      %57 = vector.multi_reduction <add>, %55, %cst_29 [0] : vector<8x128xf32> to vector<128xf32>
      %58 = vector.shape_cast %57 : vector<128xf32> to vector<1x128xf32>
      %59 = arith.addf %56, %58 : vector<1x128xf32>
      %c2_30 = arith.constant 2 : index
      %c0_31 = arith.constant 0 : index
      %60 = vector.load %arg9[%c2_30, %c0_31] : memref<4x128xf32, #tpu.memory_space<vmem>>, vector<1x128xf32>
      tpu.vector_store %arg9[%c2_30, %c0_31], %59 {strides = array<i32>} : memref<4x128xf32, #tpu.memory_space<vmem>>, vector<1x128xf32>,
      %c3 = arith.constant 3 : index
      %c0_32 = arith.constant 0 : index
      %61 = vector.load %arg9[%c3, %c0_32] : memref<4x128xf32, #tpu.memory_space<vmem>>, vector<1x128xf32>
      %62 = arith.mulf %55, %51 : vector<8x128xf32>
      %cst_33 = arith.constant dense<0.000000e+00> : vector<128xf32>
      %63 = vector.multi_reduction <add>, %62, %cst_33 [0] : vector<8x128xf32> to vector<128xf32>
      %64 = vector.shape_cast %63 : vector<128xf32> to vector<1x128xf32>
      %65 = arith.addf %61, %64 : vector<1x128xf32>
      %c3_34 = arith.constant 3 : index
      %c0_35 = arith.constant 0 : index
      %66 = vector.load %arg9[%c3_34, %c0_35] : memref<4x128xf32, #tpu.memory_space<vmem>>, vector<1x128xf32>
      tpu.vector_store %arg9[%c3_34, %c0_35], %65 {strides = array<i32>} : memref<4x128xf32, #tpu.memory_space<vmem>>, vector<1x128xf32>,
    } else {
    }
    return
  }
  func.func @transform_0(%arg0: i32, %arg1: i32) -> (i32, i32) {
    %c0_i32 = arith.constant 0 : i32
    %c0_i32_0 = arith.constant 0 : i32
    return %arg1, %c0_i32 : i32, i32
  }
  func.func @transform_1(%arg0: i32, %arg1: i32) -> (i32, i32) {
    %c0_i32 = arith.constant 0 : i32
    %c0_i32_0 = arith.constant 0 : i32
    %c0_i32_1 = arith.constant 0 : i32
    return %c0_i32, %c0_i32_0 : i32, i32
  }
  func.func @transform_2(%arg0: i32, %arg1: i32) -> (i32, i32) {
    %c0_i32 = arith.constant 0 : i32
    %c0_i32_0 = arith.constant 0 : i32
    %c0_i32_1 = arith.constant 0 : i32
    return %c0_i32, %c0_i32_0 : i32, i32
  }
  func.func @transform_3(%arg0: i32, %arg1: i32) -> (i32, i32) {
    %c0_i32 = arith.constant 0 : i32
    %c0_i32_0 = arith.constant 0 : i32
    %c0_i32_1 = arith.constant 0 : i32
    return %c0_i32, %c0_i32_0 : i32, i32
  }
  func.func @transform_4(%arg0: i32, %arg1: i32) -> (i32, i32) {
    %c0_i32 = arith.constant 0 : i32
    %c0_i32_0 = arith.constant 0 : i32
    %c0_i32_1 = arith.constant 0 : i32
    return %c0_i32, %c0_i32_0 : i32, i32
  }
  func.func @transform_5(%arg0: i32, %arg1: i32) -> (i32, i32) {
    %c0_i32 = arith.constant 0 : i32
    %c0_i32_0 = arith.constant 0 : i32
    %c0_i32_1 = arith.constant 0 : i32
    return %c0_i32, %c0_i32_0 : i32, i32
  }
  func.func @transform_6(%arg0: i32, %arg1: i32) -> (i32, i32) {
    %c0_i32 = arith.constant 0 : i32
    %c0_i32_0 = arith.constant 0 : i32
    %c0_i32_1 = arith.constant 0 : i32
    return %c0_i32, %c0_i32_0 : i32, i32
  }
  func.func @transform_7(%arg0: i32, %arg1: i32) -> (i32, i32) {
    %c0_i32 = arith.constant 0 : i32
    %c0_i32_0 = arith.constant 0 : i32
    %c0_i32_1 = arith.constant 0 : i32
    return %c0_i32, %c0_i32_0 : i32, i32
  }
}

module attributes {stable_mosaic.version = 11 : i64} {
  func.func @_apply_kernel(%arg0: i32, %arg1: memref<8x32xf32, #tpu.memory_space<vmem>>, %arg2: memref<32x128xbf16, #tpu.memory_space<vmem>>, %arg3: memref<1x128xf32, #tpu.memory_space<vmem>>, %arg4: memref<128x128xbf16, #tpu.memory_space<vmem>>, %arg5: memref<1x128xf32, #tpu.memory_space<vmem>>, %arg6: memref<128x1024xbf16, #tpu.memory_space<vmem>>, %arg7: memref<1x1024xf32, #tpu.memory_space<vmem>>, %arg8: memref<8x1024xf32, #tpu.memory_space<vmem>>) attributes {dimension_semantics = [#tpu.dimension_semantics<parallel>], iteration_bounds = array<i64: 1>, scalar_prefetch = 0 : i64, scratch_operands = 0 : i64, tpu.core_type = #tpu.core_type<tc>, window_params = [{transform_indices = @transform_0, window_bounds = array<i64: 8, 32>}, {pipeline_mode = #tpu.pipeline_mode<synchronous>, transform_indices = @transform_1, window_bounds = array<i64: 32, 128>}, {pipeline_mode = #tpu.pipeline_mode<synchronous>, transform_indices = @transform_2, window_bounds = array<i64: 1, 128>}, {pipeline_mode = #tpu.pipeline_mode<synchronous>, transform_indices = @transform_3, window_bounds = array<i64: 128, 128>}, {pipeline_mode = #tpu.pipeline_mode<synchronous>, transform_indices = @transform_4, window_bounds = array<i64: 1, 128>}, {pipeline_mode = #tpu.pipeline_mode<synchronous>, transform_indices = @transform_5, window_bounds = array<i64: 128, 1024>}, {pipeline_mode = #tpu.pipeline_mode<synchronous>, transform_indices = @transform_6, window_bounds = array<i64: 1, 1024>}, {transform_indices = @transform_7, window_bounds = array<i64: 8, 1024>}]} {
    %c0 = arith.constant 0 : index
    %c0_0 = arith.constant 0 : index
    %0 = vector.load %arg1[%c0, %c0_0] : memref<8x32xf32, #tpu.memory_space<vmem>>, vector<8x32xf32>
    %1 = arith.truncf %0 : vector<8x32xf32> to vector<8x32xbf16>
    %c0_1 = arith.constant 0 : index
    %c0_2 = arith.constant 0 : index
    %2 = vector.load %arg2[%c0_1, %c0_2] : memref<32x128xbf16, #tpu.memory_space<vmem>>, vector<32x128xbf16>
    %cst = arith.constant dense<0.000000e+00> : vector<8x128xf32>
    %3 = tpu.matmul %1, %2, %cst {dimension_numbers = #tpu.dot_dimension_numbers<[1], [0], [0], [1], [0, 0, 1, 1], [], []>} : vector<8x32xbf16>, vector<32x128xbf16>, vector<8x128xf32> -> vector<8x128xf32>
    %c0_3 = arith.constant 0 : index
    %c0_4 = arith.constant 0 : index
    %4 = vector.load %arg3[%c0_3, %c0_4] : memref<1x128xf32, #tpu.memory_space<vmem>>, vector<1x128xf32>
    %5 = vector.broadcast %4 : vector<1x128xf32> to vector<8x128xf32>
    %6 = arith.addf %3, %5 : vector<8x128xf32>
    %cst_5 = arith.constant 0.000000e+00 : f32
    %7 = vector.broadcast %cst_5 : f32 to vector<8x128xf32>
    %8 = arith.maximumf %6, %7 : vector<8x128xf32>
    %9 = arith.truncf %8 : vector<8x128xf32> to vector<8x128xbf16>
    %c0_6 = arith.constant 0 : index
    %c0_7 = arith.constant 0 : index
    %10 = vector.load %arg4[%c0_6, %c0_7] : memref<128x128xbf16, #tpu.memory_space<vmem>>, vector<128x128xbf16>
    %cst_8 = arith.constant dense<0.000000e+00> : vector<8x128xf32>
    %11 = tpu.matmul %9, %10, %cst_8 {dimension_numbers = #tpu.dot_dimension_numbers<[1], [0], [0], [1], [0, 0, 1, 1], [], []>} : vector<8x128xbf16>, vector<128x128xbf16>, vector<8x128xf32> -> vector<8x128xf32>
    %c0_9 = arith.constant 0 : index
    %c0_10 = arith.constant 0 : index
    %12 = vector.load %arg5[%c0_9, %c0_10] : memref<1x128xf32, #tpu.memory_space<vmem>>, vector<1x128xf32>
    %13 = vector.broadcast %12 : vector<1x128xf32> to vector<8x128xf32>
    %14 = arith.addf %11, %13 : vector<8x128xf32>
    %cst_11 = arith.constant 0.000000e+00 : f32
    %15 = vector.broadcast %cst_11 : f32 to vector<8x128xf32>
    %16 = arith.maximumf %14, %15 : vector<8x128xf32>
    %17 = arith.truncf %16 : vector<8x128xf32> to vector<8x128xbf16>
    %c0_12 = arith.constant 0 : index
    %c0_13 = arith.constant 0 : index
    %18 = vector.load %arg6[%c0_12, %c0_13] : memref<128x1024xbf16, #tpu.memory_space<vmem>>, vector<128x1024xbf16>
    %cst_14 = arith.constant dense<0.000000e+00> : vector<8x1024xf32>
    %19 = tpu.matmul %17, %18, %cst_14 {dimension_numbers = #tpu.dot_dimension_numbers<[1], [0], [0], [1], [0, 0, 1, 1], [], []>} : vector<8x128xbf16>, vector<128x1024xbf16>, vector<8x1024xf32> -> vector<8x1024xf32>
    %c0_15 = arith.constant 0 : index
    %c0_16 = arith.constant 0 : index
    %20 = vector.load %arg7[%c0_15, %c0_16] : memref<1x1024xf32, #tpu.memory_space<vmem>>, vector<1x1024xf32>
    %21 = vector.broadcast %20 : vector<1x1024xf32> to vector<8x1024xf32>
    %22 = arith.addf %19, %21 : vector<8x1024xf32>
    %c0_17 = arith.constant 0 : index
    %c0_18 = arith.constant 0 : index
    %23 = vector.load %arg8[%c0_17, %c0_18] : memref<8x1024xf32, #tpu.memory_space<vmem>>, vector<8x1024xf32>
    tpu.vector_store %arg8[%c0_17, %c0_18], %22 {strides = array<i32>} : memref<8x1024xf32, #tpu.memory_space<vmem>>, vector<8x1024xf32>,
    return
  }
  func.func @transform_0(%arg0: i32) -> (i32, i32) {
    %c0_i32 = arith.constant 0 : i32
    %c0_i32_0 = arith.constant 0 : i32
    return %arg0, %c0_i32 : i32, i32
  }
  func.func @transform_1(%arg0: i32) -> (i32, i32) {
    %c0_i32 = arith.constant 0 : i32
    %c0_i32_0 = arith.constant 0 : i32
    %c0_i32_1 = arith.constant 0 : i32
    return %c0_i32, %c0_i32_0 : i32, i32
  }
  func.func @transform_2(%arg0: i32) -> (i32, i32) {
    %c0_i32 = arith.constant 0 : i32
    %c0_i32_0 = arith.constant 0 : i32
    %c0_i32_1 = arith.constant 0 : i32
    return %c0_i32, %c0_i32_0 : i32, i32
  }
  func.func @transform_3(%arg0: i32) -> (i32, i32) {
    %c0_i32 = arith.constant 0 : i32
    %c0_i32_0 = arith.constant 0 : i32
    %c0_i32_1 = arith.constant 0 : i32
    return %c0_i32, %c0_i32_0 : i32, i32
  }
  func.func @transform_4(%arg0: i32) -> (i32, i32) {
    %c0_i32 = arith.constant 0 : i32
    %c0_i32_0 = arith.constant 0 : i32
    %c0_i32_1 = arith.constant 0 : i32
    return %c0_i32, %c0_i32_0 : i32, i32
  }
  func.func @transform_5(%arg0: i32) -> (i32, i32) {
    %c0_i32 = arith.constant 0 : i32
    %c0_i32_0 = arith.constant 0 : i32
    %c0_i32_1 = arith.constant 0 : i32
    return %c0_i32, %c0_i32_0 : i32, i32
  }
  func.func @transform_6(%arg0: i32) -> (i32, i32) {
    %c0_i32 = arith.constant 0 : i32
    %c0_i32_0 = arith.constant 0 : i32
    %c0_i32_1 = arith.constant 0 : i32
    return %c0_i32, %c0_i32_0 : i32, i32
  }
  func.func @transform_7(%arg0: i32) -> (i32, i32) {
    %c0_i32 = arith.constant 0 : i32
    %c0_i32_0 = arith.constant 0 : i32
    return %arg0, %c0_i32 : i32, i32
  }
}

</mosaic_0001>

<llo_original>
// kernel: decoder_forward.2
$region0: #{decoder_forward.2}
  #allocation0 [shape = 'u32[]', space=smem, size = 0x4, offset = 0x4, fixed_abs, tag = 'smem constant byte address 0x4 - core index']
  #allocation1 [shape = 'u32[144,128]{1,0:T(1,128)}', space=vmem, size = 0x12000, scoped, tag = 'internal scratch']
  %s0 = inlined_call_operand.vmem [shape: f32[8,32], index: 0, kind: input, shape index: {}]
  %s1 = inlined_call_operand.hbm [shape: f32[32,128], index: 1, kind: input, shape index: {}]
  %s2 = inlined_call_operand.vmem [shape: f32[1,128], index: 2, kind: input, shape index: {}]
  %s3 = inlined_call_operand.vmem [shape: f32[1,128], index: 3, kind: input, shape index: {}]
  %s4 = inlined_call_operand.vmem [shape: f32[1,128], index: 4, kind: input, shape index: {}]
  %s5 = inlined_call_operand.hbm [shape: f32[128,128], index: 5, kind: input, shape index: {}]
  %s6 = inlined_call_operand.vmem [shape: f32[1,128], index: 6, kind: input, shape index: {}]
  %s7 = inlined_call_operand.vmem [shape: f32[4,128], index: 7, kind: output, shape index: {}]
  %s8 = sld [smem:[#allocation0]]
  $region81: #{decoder_forward.2} parent=0
    _
  %s10 = ssub.s32 1, %s8
  %s11 = scalar_select 0, %s10, %s8
  $region1: #{decoder_forward.2} parent=0
    #allocation2 [shape = 'u8[16384]{0}', space=vmem, size = 0x4000, scoped, tag = 'input window, operand 1, single buffered']
    #allocation3 [shape = 's32[2]{0}', space=sflag, size = 0x8, scoped, tag = 'scoped memory for decoder_forward.2']
    #allocation4 [shape = 'u8[65536]{0}', space=vmem, size = 0x10000, scoped, tag = 'input window, operand 5, single buffered']
    #allocation5 [shape = 's32[1]{0}', space=sflag, size = 0x4, scoped, tag = 'scoped memory for decoder_forward.2']
    %12 = vsyncpa [#allocation3], 0
    %13 = vsyncpa [#allocation5], 0
    loop: start=0, step=1, limit=4
    $region2: #{decoder_forward.2} parent=1 // loop_pre_header
      _
    $region3: #{decoder_forward.2} parent=1 // loop_header
      %s15 = sphi 0, %s19
      %p16 = scmp.ge.s32.totalorder %s15, 4
      %s22 = sphi 0, %s34
      %s23 = sphi 0, %s30
      %s24 = sphi 0, %s22
      %s25 = sphi 0, %s23
      %s26 = sphi 0, %s24
      %s27 = sphi 0, %s25
      %s37 = sphi 0, %s39
      %s40 = sphi 0, %s37
      %s41 = sphi 0, %s40
      %s57 = sphi 0, %s41
      %s61 = sphi 0, %s61
      %s63 = sphi 0, %s61
      %s64 = sphi 0, %s63
      %s78 = sphi 0, %s64
      %s82 = sphi 0, %s82
      %s84 = sphi 0, %s82
      %s85 = sphi 0, %s84
      %s99 = sphi 0, %s85
      %s103 = sphi 0, %s103
      %s105 = sphi 0, %s103
      %s106 = sphi 0, %s105
      %s120 = sphi 0, %s106
      %s124 = sphi 0, %s124
      %s126 = sphi 0, %s124
      %s127 = sphi 0, %s126
      %s141 = sphi 0, %s127
      %s145 = sphi 0, %s145
      %s147 = sphi 0, %s145
      %s148 = sphi 0, %s147
      %s162 = sphi 0, %s148
      %s166 = sphi 0, %s166
      %s168 = sphi 0, %s166
      %s169 = sphi 0, %s168
      %s183 = sphi 0, %s169
      %s187 = sphi 0, %s187
      %s189 = sphi 0, %s187
      %s190 = sphi 0, %s189
      %s204 = sphi 0, %s190
    $region4: #{decoder_forward.2} parent=1 // loop_header_branch
      %18 = sbr.rel (%p16) target = $region8
    $region5: #{decoder_forward.2} parent=1 // loop_body
      %s20 = ssub.s32 %s15, 1
      %s21 = ssub.s32 %s15, 2
      %s28 = sadd.s32 1, %s23
      %p29 = scmp.ge.s32.totalorder %s28, 1
      %s30 = scalar_select %p29, 0, %s28
      %s31 = sadd.s32 1, %s22
      %s32 = scalar_select %p29, %s31, %s22
      %p33 = scmp.ge.s32.totalorder %s32, 2
      %s34 = scalar_select %p33, 0, %s32
      %s35 = ssub.s32 %s23, %s30
      %p36 = scmp.eq.s32.totalorder %s35, 0
      %s38 = sadd.s32 %s37, 1
      %s39 = scalar_select %p36, %s37, %s38
      %p42 = pneg %p36
      %p43 = scmp.eq.s32.totalorder %s15, 1
      %p44 = por %p42, %p43
      %p45 = scmp.ne.s32.totalorder %s37, %s40
      %p46 = scmp.eq.s32.totalorder %s15, 0
      %p47 = por %p45, %p46
      %p48 = scmp.ne.s32.totalorder %s37, %s40
      %p49 = scmp.eq.s32.totalorder %s20, 1
      %p50 = por %p48, %p49
      %p51 = scmp.ne.s32.totalorder %s40, %s41
      %p52 = scmp.eq.s32.totalorder %s20, 0
      %p53 = por %p51, %p52
      %p54 = scmp.ne.s32.totalorder %s40, %s41
      %p55 = scmp.eq.s32.totalorder %s21, 1
      %p56 = por %p54, %p55
      %p58 = scmp.ne.s32.totalorder %s41, %s57
      %p59 = scmp.eq.s32.totalorder %s21, 0
      %p60 = por %p58, %p59
      %s62 = sadd.s32 %s61, 1
      %p65 = scmp.eq.s32.totalorder %s15, 1
      %p66 = scmp.ne.s32.totalorder %s61, %s63
      %p67 = scmp.eq.s32.totalorder %s15, 0
      %p68 = por %p66, %p67
      %p69 = scmp.ne.s32.totalorder %s61, %s63
      %p70 = scmp.eq.s32.totalorder %s20, 1
      %p71 = por %p69, %p70
      %p72 = scmp.ne.s32.totalorder %s63, %s64
      %p73 = scmp.eq.s32.totalorder %s20, 0
      %p74 = por %p72, %p73
      %p75 = scmp.ne.s32.totalorder %s63, %s64
      %p76 = scmp.eq.s32.totalorder %s21, 1
      %p77 = por %p75, %p76
      %p79 = scmp.ne.s32.totalorder %s64, %s78
      %p80 = scmp.eq.s32.totalorder %s21, 0
      %p81 = por %p79, %p80
      %s83 = sadd.s32 %s82, 1
      %p86 = scmp.eq.s32.totalorder %s15, 1
      %p87 = scmp.ne.s32.totalorder %s82, %s84
      %p88 = scmp.eq.s32.totalorder %s15, 0
      %p89 = por %p87, %p88
      %p90 = scmp.ne.s32.totalorder %s82, %s84
      %p91 = scmp.eq.s32.totalorder %s20, 1
      %p92 = por %p90, %p91
      %p93 = scmp.ne.s32.totalorder %s84, %s85
      %p94 = scmp.eq.s32.totalorder %s20, 0
      %p95 = por %p93, %p94
      %p96 = scmp.ne.s32.totalorder %s84, %s85
      %p97 = scmp.eq.s32.totalorder %s21, 1
      %p98 = por %p96, %p97
      %p100 = scmp.ne.s32.totalorder %s85, %s99
      %p101 = scmp.eq.s32.totalorder %s21, 0
      %p102 = por %p100, %p101
      %s104 = sadd.s32 %s103, 1
      %p107 = scmp.eq.s32.totalorder %s15, 1
      %p108 = scmp.ne.s32.totalorder %s103, %s105
      %p109 = scmp.eq.s32.totalorder %s15, 0
      %p110 = por %p108, %p109
      %p111 = scmp.ne.s32.totalorder %s103, %s105
      %p112 = scmp.eq.s32.totalorder %s20, 1
      %p113 = por %p111, %p112
      %p114 = scmp.ne.s32.totalorder %s105, %s106
      %p115 = scmp.eq.s32.totalorder %s20, 0
      %p116 = por %p114, %p115
      %p117 = scmp.ne.s32.totalorder %s105, %s106
      %p118 = scmp.eq.s32.totalorder %s21, 1
      %p119 = por %p117, %p118
      %p121 = scmp.ne.s32.totalorder %s106, %s120
      %p122 = scmp.eq.s32.totalorder %s21, 0
      %p123 = por %p121, %p122
      %s125 = sadd.s32 %s124, 1
      %p128 = scmp.eq.s32.totalorder %s15, 1
      %p129 = scmp.ne.s32.totalorder %s124, %s126
      %p130 = scmp.eq.s32.totalorder %s15, 0
      %p131 = por %p129, %p130
      %p132 = scmp.ne.s32.totalorder %s124, %s126
      %p133 = scmp.eq.s32.totalorder %s20, 1
      %p134 = por %p132, %p133
      %p135 = scmp.ne.s32.totalorder %s126, %s127
      %p136 = scmp.eq.s32.totalorder %s20, 0
      %p137 = por %p135, %p136
      %p138 = scmp.ne.s32.totalorder %s126, %s127
      %p139 = scmp.eq.s32.totalorder %s21, 1
      %p140 = por %p138, %p139
      %p142 = scmp.ne.s32.totalorder %s127, %s141
      %p143 = scmp.eq.s32.totalorder %s21, 0
      %p144 = por %p142, %p143
      %s146 = sadd.s32 %s145, 1
      %p149 = scmp.eq.s32.totalorder %s15, 1
      %p150 = scmp.ne.s32.totalorder %s145, %s147
      %p151 = scmp.eq.s32.totalorder %s15, 0
      %p152 = por %p150, %p151
      %p153 = scmp.ne.s32.totalorder %s145, %s147
      %p154 = scmp.eq.s32.totalorder %s20, 1
      %p155 = por %p153, %p154
      %p156 = scmp.ne.s32.totalorder %s147, %s148
      %p157 = scmp.eq.s32.totalorder %s20, 0
      %p158 = por %p156, %p157
      %p159 = scmp.ne.s32.totalorder %s147, %s148
      %p160 = scmp.eq.s32.totalorder %s21, 1
      %p161 = por %p159, %p160
      %p163 = scmp.ne.s32.totalorder %s148, %s162
      %p164 = scmp.eq.s32.totalorder %s21, 0
      %p165 = por %p163, %p164
      %s167 = sadd.s32 %s166, 1
      %p170 = scmp.eq.s32.totalorder %s15, 1
      %p171 = scmp.ne.s32.totalorder %s166, %s168
      %p172 = scmp.eq.s32.totalorder %s15, 0
      %p173 = por %p171, %p172
      %p174 = scmp.ne.s32.totalorder %s166, %s168
      %p175 = scmp.eq.s32.totalorder %s20, 1
      %p176 = por %p174, %p175
      %p177 = scmp.ne.s32.totalorder %s168, %s169
      %p178 = scmp.eq.s32.totalorder %s20, 0
      %p179 = por %p177, %p178
      %p180 = scmp.ne.s32.totalorder %s168, %s169
      %p181 = scmp.eq.s32.totalorder %s21, 1
      %p182 = por %p180, %p181
      %p184 = scmp.ne.s32.totalorder %s169, %s183
      %p185 = scmp.eq.s32.totalorder %s21, 0
      %p186 = por %p184, %p185
      %s188 = sadd.s32 %s187, 1
      %p191 = scmp.eq.s32.totalorder %s15, 1
      %p192 = scmp.ne.s32.totalorder %s187, %s189
      %p193 = scmp.eq.s32.totalorder %s15, 0
      %p194 = por %p192, %p193
      %p195 = scmp.ne.s32.totalorder %s187, %s189
      %p196 = scmp.eq.s32.totalorder %s20, 1
      %p197 = por %p195, %p196
      %p198 = scmp.ne.s32.totalorder %s189, %s190
      %p199 = scmp.eq.s32.totalorder %s20, 0
      %p200 = por %p198, %p199
      %p201 = scmp.ne.s32.totalorder %s189, %s190
      %p202 = scmp.eq.s32.totalorder %s21, 1
      %p203 = por %p201, %p202
      %p205 = scmp.ne.s32.totalorder %s190, %s204
      %p206 = scmp.eq.s32.totalorder %s21, 0
      %p207 = por %p205, %p206
      %p208 = scmp.le.s32.totalorder 1, %s15
      %p209 = scmp.lt.s32.totalorder %s15, 3
      %p210 = pnand %p208, %p209
      %p211 = pneg %p210
      // Predicated region
      $region9: #{decoder_forward.2} parent=5 // pred_check
        _
      $region10: #{decoder_forward.2} parent=5 // pred_check_branch
        %213 = sbr.rel (%p210) target = $region12
      $region11: #{decoder_forward.2} parent=5 // pred_region
        %s214 = ssub.s32 %s15, 1
        // Predicated region
        $region13: #{decoder_forward.2} parent=11 // pred_check
          %p215 = pneg %p53
        $region14: #{decoder_forward.2} parent=11 // pred_check_branch
          %217 = sbr.rel (%p215) target = $region16
        $region15: #{decoder_forward.2} parent=11 // pred_region
          %p218 = scmp.lt.s32.totalorder %s25, 0
          %s219 = scalar_select %p218, %s25, 0
          %s220 = smul.addr %s219, 8
          %s221 = scalar_lea.vmem %s0, %s220
        $region16: #{decoder_forward.2} parent=11 // pred_fallthru
          _
        // Predicated region
        $region17: #{decoder_forward.2} parent=11 // pred_check
          %p222 = pneg %p74
        $region18: #{decoder_forward.2} parent=11 // pred_check_branch
          %224 = sbr.rel (%p222) target = $region20
        $region19: #{decoder_forward.2} parent=11 // pred_region
          %s226 = ssub.s32 512, 512
          %227 = vsyncadd [#allocation3], %s226
          %s228 = sshll.u32 [#allocation2], 4
          %s229 = int_to_ptr.vmem [resolvable:$true] %s228
          %234 = dma.hbm_to_vmem [thread:$0]  %s1, 512, %s229, [#allocation3], 128, 128, 8
        $region20: #{decoder_forward.2} parent=11 // pred_fallthru
          _
        // Predicated region
        $region21: #{decoder_forward.2} parent=11 // pred_check
          %p235 = pneg %p95
        $region22: #{decoder_forward.2} parent=11 // pred_check_branch
          %237 = sbr.rel (%p235) target = $region24
        $region23: #{decoder_forward.2} parent=11 // pred_region
          _
        $region24: #{decoder_forward.2} parent=11 // pred_fallthru
          _
        // Predicated region
        $region25: #{decoder_forward.2} parent=11 // pred_check
          %p238 = pneg %p116
        $region26: #{decoder_forward.2} parent=11 // pred_check_branch
          %240 = sbr.rel (%p238) target = $region28
        $region27: #{decoder_forward.2} parent=11 // pred_region
          _
        $region28: #{decoder_forward.2} parent=11 // pred_fallthru
          _
        // Predicated region
        $region29: #{decoder_forward.2} parent=11 // pred_check
          %p241 = pneg %p137
        $region30: #{decoder_forward.2} parent=11 // pred_check_branch
          %243 = sbr.rel (%p241) target = $region32
        $region31: #{decoder_forward.2} parent=11 // pred_region
          _
        $region32: #{decoder_forward.2} parent=11 // pred_fallthru
          _
        // Predicated region
        $region33: #{decoder_forward.2} parent=11 // pred_check
          %p244 = pneg %p158
        $region34: #{decoder_forward.2} parent=11 // pred_check_branch
          %246 = sbr.rel (%p244) target = $region36
        $region35: #{decoder_forward.2} parent=11 // pred_region
          %s248 = ssub.s32 2048, 2048
          %249 = vsyncadd [#allocation5], %s248
          %s250 = sshll.u32 [#allocation4], 4
          %s251 = int_to_ptr.vmem [resolvable:$true] %s250
          %256 = dma.hbm_to_vmem [thread:$0]  %s5, 2048, %s251, [#allocation5], 128, 128, 8
        $region36: #{decoder_forward.2} parent=11 // pred_fallthru
          _
        // Predicated region
        $region37: #{decoder_forward.2} parent=11 // pred_check
          %p257 = pneg %p179
        $region38: #{decoder_forward.2} parent=11 // pred_check_branch
          %259 = sbr.rel (%p257) target = $region40
        $region39: #{decoder_forward.2} parent=11 // pred_region
          _
        $region40: #{decoder_forward.2} parent=11 // pred_fallthru
          _
      $region12: #{decoder_forward.2} parent=5 // pred_fallthru
        _
      %p260 = scmp.lt.s32.totalorder %s15, 2
      // Predicated region
      $region41: #{decoder_forward.2} parent=5 // pred_check
        %p261 = pneg %p260
      $region42: #{decoder_forward.2} parent=5 // pred_check_branch
        %263 = sbr.rel (%p261) target = $region44
      $region43: #{decoder_forward.2} parent=5 // pred_region
        _
      $region44: #{decoder_forward.2} parent=5 // pred_fallthru
        _
      %p264 = scmp.le.s32.totalorder 1, %s15
      %p265 = scmp.lt.s32.totalorder %s15, 3
      %p266 = pnand %p264, %p265
      %p267 = pneg %p266
      // Predicated region
      $region45: #{decoder_forward.2} parent=5 // pred_check
        _
      $region46: #{decoder_forward.2} parent=5 // pred_check_branch
        %269 = sbr.rel (%p266) target = $region48
      $region47: #{decoder_forward.2} parent=5 // pred_region
        %s270 = ssub.s32 %s15, 1
        // Predicated region
        $region49: #{decoder_forward.2} parent=47 // pred_check
          %p271 = pneg %p74
        $region50: #{decoder_forward.2} parent=47 // pred_check_branch
          %273 = sbr.rel (%p271) target = $region52
        $region51: #{decoder_forward.2} parent=47 // pred_region
          %274 = dma.done [#allocation3], 512
        $region52: #{decoder_forward.2} parent=47 // pred_fallthru
          _
        // Predicated region
        $region53: #{decoder_forward.2} parent=47 // pred_check
          %p275 = pneg %p158
        $region54: #{decoder_forward.2} parent=47 // pred_check_branch
          %277 = sbr.rel (%p275) target = $region56
        $region55: #{decoder_forward.2} parent=47 // pred_region
          %278 = dma.done [#allocation5], 2048
        $region56: #{decoder_forward.2} parent=47 // pred_fallthru
          _
        %p279 = scmp.lt.s32.totalorder %s25, 0
        %s280 = scalar_select %p279, %s25, 0
        %s281 = smul.addr %s280, 8
        %s282 = scalar_lea.vmem %s0, %s281
        %p283 = pneg %p53
        %p284 = pneg %p50
        %p285 = pneg %p74
        %p286 = pneg %p71
        %p287 = pneg %p95
        %p288 = pneg %p92
        %p289 = pneg %p116
        %p290 = pneg %p113
        %p291 = pneg %p137
        %p292 = pneg %p134
        %p293 = pneg %p158
        %p294 = pneg %p155
        %p295 = pneg %p179
        %p296 = pneg %p176
        %p297 = pneg %p200
        %p298 = pneg %p197
        %p299 = scmp.lt.s32.totalorder %s25, 0
        %s300 = scalar_select %p299, %s25, 0
        %s301 = smul.addr %s300, 8
        %s302 = scalar_lea.vmem %s0, %s301
        %p303 = scmp.eq.s32.totalorder %s24, 0
        %p304 = scmp.eq.s32.totalorder %s25, 0
        %p305 = pnand %p303, %p304
        %p306 = pneg %p305
        // Predicated region
        $region57: #{decoder_forward.2} parent=47 // pred_check
          _
        $region58: #{decoder_forward.2} parent=47 // pred_check_branch
          %308 = sbr.rel (%p305) target = $region60
        $region59: #{decoder_forward.2} parent=47 // pred_region
          %309 = vst [vmem:[%s7] sm:$0xf] 0.0
        $region60: #{decoder_forward.2} parent=47 // pred_fallthru
          _
        %v310 = vlaneseq
        %v311 = vshrl.u32 %v310, 7
        %s312 = smul.u32 %s25, 8
        %v313 = vstv %s312
        %v314 = vadd.s32 %v311, %v313
        %vm315 = vcmp.lt.s32.totalorder %v314, 2
        %v316 = vld [vmem:[%s302] sm:$0xff]
        %v317 = vld [vmem:[#allocation2] sm:$0xff]
        %v318 = vld [vmem:[#allocation2 + $0x8] sm:$0xff]
        %v319 = vld [vmem:[#allocation2 + $0x10] sm:$0xff]
        %v320 = vld [vmem:[#allocation2 + $0x18] sm:$0xff]
        %v321 = vld [vmem:[%s2] sm:$0x1]
        %v323 = vlaneseq
        %v324 = vshrl.u32 %v323, 7
        %v325 = vsub.s32 0, %v324
        %v326 = vrot.slane %v321, %v325
        %vm328 = vcmask 261120
        %v330 = vsel %vm328, %v316, 0
        %332 = vmatprep.subr.mxu0 0.0
        %333 = vmatpush1.msra.mxu0 %v317
        %334 = vmatprep.subr.mxu0 0.0
        %335 = vmatpush1.msra.mxu0 %v318
        %336 = vmatprep.subr.mxu0 0.0
        %337 = vmatpush1.msra.mxu0 %v319
        %338 = vmatprep.subr.mxu0 0.0
        %339 = vmatpush1.msra.mxu0 %v320
        %340 = vmatprep.subr.mxu0 0.0
        %341 = vmatpush1.msra.mxu0 0.0
        %342 = vmatprep.subr.mxu0 0.0
        %343 = vmatpush1.msra.mxu0 0.0
        %344 = vmatprep.subr.mxu0 0.0
        %345 = vmatpush1.msra.mxu0 0.0
        %346 = vmatprep.subr.mxu0 0.0
        %347 = vmatpush1.msra.mxu0 0.0
        %348 = vmatprep.subr.mxu0 0.0
        %349 = vmatpush1.msra.mxu0 0.0
        %350 = vmatprep.subr.mxu0 0.0
        %351 = vmatpush1.msra.mxu0 0.0
        %352 = vmatprep.subr.mxu0 0.0
        %353 = vmatpush1.msra.mxu0 0.0
        %354 = vmatprep.subr.mxu0 0.0
        %355 = vmatpush1.msra.mxu0 0.0
        %356 = vmatprep.subr.mxu0 0.0
        %357 = vmatpush1.msra.mxu0 0.0
        %358 = vmatprep.subr.mxu0 0.0
        %359 = vmatpush1.msra.mxu0 0.0
        %360 = vmatprep.subr.mxu0 0.0
        %361 = vmatpush1.msra.mxu0 0.0
        %362 = vmatprep.subr.mxu0 0.0
        %363 = vmatpush1.msra.mxu0 0.0
        %364 = vmatprep.subr.mxu0 0.0
        %365 = vmatpush1.msra.mxu0 0.0
        %366 = vmatprep.subr.mxu0 0.0
        %367 = vmatpush1.msra.mxu0 0.0
        %368 = vmatprep.subr.mxu0 0.0
        %369 = vmatpush1.msra.mxu0 0.0
        %370 = vmatprep.subr.mxu0 0.0
        %371 = vmatpush1.msra.mxu0 0.0
        %372 = vmatprep.subr.mxu0 0.0
        %373 = vmatpush1.msra.mxu0 0.0
        %374 = vmatprep.subr.mxu0 0.0
        %375 = vmatpush1.msra.mxu0 0.0
        %376 = vmatprep.subr.mxu0 0.0
        %377 = vmatpush1.msra.mxu0 0.0
        %378 = vmatprep.subr.mxu0 0.0
        %379 = vmatpush1.msra.mxu0 0.0
        %380 = vmatprep.subr.mxu0 0.0
        %381 = vmatpush1.msra.mxu0 0.0
        %382 = vmatprep.subr.mxu0 0.0
        %383 = vmatpush1.msra.mxu0 0.0
        %384 = vmatprep.subr.mxu0 0.0
        %385 = vmatpush1.msra.mxu0 0.0
        %386 = vmatprep.subr.mxu0 0.0
        %387 = vmatpush1.msra.mxu0 0.0
        %388 = vmatprep.subr.mxu0 0.0
        %389 = vmatpush1.msra.mxu0 0.0
        %390 = vmatprep.subr.mxu0 0.0
        %391 = vmatpush1.msra.mxu0 0.0
        %392 = vmatprep.subr.mxu0 0.0
        %393 = vmatpush1.msra.mxu0 0.0
        %394 = vmatprep.subr.mxu0 0.0
        %395 = vmatpush1.msra.mxu0 0.0
        %396 = vmatprep.mubr.f32.mxu0 0.0
        %397 = vmatmul.mubr.f32.gmra.mrb[0].mxu0 %v330
        %v398 = vpop.f32.mrb[0].mxu0
        %v399 = vadd.f32 %v326, %v398
        %v400 = vpop.f32.mrb[0].mxu0
        %401 = vdwg.mxu0
        // Predicated region
        $region61: #{decoder_forward.2} parent=47 // pred_check
          %p402 = pneg %p303
        $region62: #{decoder_forward.2} parent=47 // pred_check_branch
          %404 = sbr.rel (%p402) target = $region64
        $region63: #{decoder_forward.2} parent=47 // pred_region
          %v405 = vsel %vm315, 1, 0
          %vm406 = vcmp.eq.s32.totalorder %v405, 1
          %v407 = vsel %vm406, %v399, 0.0
          %v408 = vld [vmem:[%s7] sm:$0x1]
          %v409 = vrot.slane %v407, 4
          %v410 = vadd.f32 %v407, %v409
          %v411 = vrot.slane %v410, 2
          %v412 = vadd.f32 %v410, %v411
          %v413 = vrot.slane %v412, 1
          %v414 = vadd.f32 %v412, %v413
          %v415 = vadd.f32 %v408, %v414
          %416 = vst [vmem:[%s7] sm:$0x1] %v415
          %v417 = vld [vmem:[%s7 + $0x1] sm:$0x1]
          %v418 = vmul.f32 %v407, %v399
          %v419 = vrot.slane %v418, 4
          %v420 = vadd.f32 %v418, %v419
          %v421 = vrot.slane %v420, 2
          %v422 = vadd.f32 %v420, %v421
          %v423 = vrot.slane %v422, 1
          %v424 = vadd.f32 %v422, %v423
          %v425 = vadd.f32 %v417, %v424
          %426 = vst [vmem:[%s7 + $0x1] sm:$0x1] %v425
        $region64: #{decoder_forward.2} parent=47 // pred_fallthru
          _
        %p427 = scmp.eq.s32.totalorder %s24, 1
        // Predicated region
        $region65: #{decoder_forward.2} parent=47 // pred_check
          %p428 = pneg %p427
        $region66: #{decoder_forward.2} parent=47 // pred_check_branch
          %430 = sbr.rel (%p428) target = $region68
        $region67: #{decoder_forward.2} parent=47 // pred_region
          %v431 = vld [vmem:[%s7] sm:$0x1]
          %v432 = vmul.f32 %v431, 0.5
          %v433 = vld [vmem:[%s7 + $0x1] sm:$0x1]
          %v434 = vmul.f32 %v433, 0.5
          %v435 = vmul.f32 %v432, %v432
          %v436 = vsub.f32 %v434, %v435
          %v437 = vmax.f32 %v436, 0.0
          %v438 = vld [vmem:[%s3] sm:$0x1]
          %v439 = vadd.f32 %v437, 1e-05
          %v440 = vrsqrt.pop %v439
          %v441 = vmul.f32 %v438, %v440
          %v442 = vlaneseq
          %v443 = vshrl.u32 %v442, 7
          %v444 = vsub.s32 0, %v443
          %v445 = vrot.slane %v432, %v444
          %v446 = vsub.f32 %v399, %v445
          %v448 = vlaneseq
          %v449 = vshrl.u32 %v448, 7
          %v450 = vsub.s32 0, %v449
          %v451 = vrot.slane %v441, %v450
          %v453 = vmul.f32 %v446, %v451
          %v454 = vld [vmem:[%s4] sm:$0x1]
          %v456 = vlaneseq
          %v457 = vshrl.u32 %v456, 7
          %v458 = vsub.s32 0, %v457
          %v459 = vrot.slane %v454, %v458
          %v461 = vadd.f32 %v453, %v459
          %v462 = vmax.f32 %v461, 0.0
          %v463 = vld [vmem:[#allocation4] sm:$0xff]
          %v464 = vld [vmem:[#allocation4 + $0x8] sm:$0xff]
          %v465 = vld [vmem:[#allocation4 + $0x10] sm:$0xff]
          %v466 = vld [vmem:[#allocation4 + $0x18] sm:$0xff]
          %v467 = vld [vmem:[#allocation4 + $0x20] sm:$0xff]
          %v468 = vld [vmem:[#allocation4 + $0x28] sm:$0xff]
          %v469 = vld [vmem:[#allocation4 + $0x30] sm:$0xff]
          %v470 = vld [vmem:[#allocation4 + $0x38] sm:$0xff]
          %v471 = vld [vmem:[#allocation4 + $0x40] sm:$0xff]
          %v472 = vld [vmem:[#allocation4 + $0x48] sm:$0xff]
          %v473 = vld [vmem:[#allocation4 + $0x50] sm:$0xff]
          %v474 = vld [vmem:[#allocation4 + $0x58] sm:$0xff]
          %v475 = vld [vmem:[#allocation4 + $0x60] sm:$0xff]
          %v476 = vld [vmem:[#allocation4 + $0x68] sm:$0xff]
          %v477 = vld [vmem:[#allocation4 + $0x70] sm:$0xff]
          %v478 = vld [vmem:[#allocation4 + $0x78] sm:$0xff]
          %v479 = vld [vmem:[%s6] sm:$0x1]
          %v481 = vlaneseq
          %v482 = vshrl.u32 %v481, 7
          %v483 = vsub.s32 0, %v482
          %v484 = vrot.slane %v479, %v483
          %486 = vmatprep.subr.mxu0 0.0
          %487 = vmatpush1.msra.mxu0 %v463
          %488 = vmatprep.subr.mxu0 0.0
          %489 = vmatpush1.msra.mxu0 %v464
          %490 = vmatprep.subr.mxu0 0.0
          %491 = vmatpush1.msra.mxu0 %v465
          %492 = vmatprep.subr.mxu0 0.0
          %493 = vmatpush1.msra.mxu0 %v466
          %494 = vmatprep.subr.mxu0 0.0
          %495 = vmatpush1.msra.mxu0 %v467
          %496 = vmatprep.subr.mxu0 0.0
          %497 = vmatpush1.msra.mxu0 %v468
          %498 = vmatprep.subr.mxu0 0.0
          %499 = vmatpush1.msra.mxu0 %v469
          %500 = vmatprep.subr.mxu0 0.0
          %501 = vmatpush1.msra.mxu0 %v470
          %502 = vmatprep.subr.mxu0 0.0
          %503 = vmatpush1.msra.mxu0 %v471
          %504 = vmatprep.subr.mxu0 0.0
          %505 = vmatpush1.msra.mxu0 %v472
          %506 = vmatprep.subr.mxu0 0.0
          %507 = vmatpush1.msra.mxu0 %v473
          %508 = vmatprep.subr.mxu0 0.0
          %509 = vmatpush1.msra.mxu0 %v474
          %510 = vmatprep.subr.mxu0 0.0
          %511 = vmatpush1.msra.mxu0 %v475
          %512 = vmatprep.subr.mxu0 0.0
          %513 = vmatpush1.msra.mxu0 %v476
          %514 = vmatprep.subr.mxu0 0.0
          %515 = vmatpush1.msra.mxu0 %v477
          %516 = vmatprep.subr.mxu0 0.0
          %517 = vmatpush1.msra.mxu0 %v478
          %518 = vmatprep.subr.mxu0 0.0
          %519 = vmatpush1.msra.mxu0 0.0
          %520 = vmatprep.subr.mxu0 0.0
          %521 = vmatpush1.msra.mxu0 0.0
          %522 = vmatprep.subr.mxu0 0.0
          %523 = vmatpush1.msra.mxu0 0.0
          %524 = vmatprep.subr.mxu0 0.0
          %525 = vmatpush1.msra.mxu0 0.0
          %526 = vmatprep.subr.mxu0 0.0
          %527 = vmatpush1.msra.mxu0 0.0
          %528 = vmatprep.subr.mxu0 0.0
          %529 = vmatpush1.msra.mxu0 0.0
          %530 = vmatprep.subr.mxu0 0.0
          %531 = vmatpush1.msra.mxu0 0.0
          %532 = vmatprep.subr.mxu0 0.0
          %533 = vmatpush1.msra.mxu0 0.0
          %534 = vmatprep.subr.mxu0 0.0
          %535 = vmatpush1.msra.mxu0 0.0
          %536 = vmatprep.subr.mxu0 0.0
          %537 = vmatpush1.msra.mxu0 0.0
          %538 = vmatprep.subr.mxu0 0.0
          %539 = vmatpush1.msra.mxu0 0.0
          %540 = vmatprep.subr.mxu0 0.0
          %541 = vmatpush1.msra.mxu0 0.0
          %542 = vmatprep.subr.mxu0 0.0
          %543 = vmatpush1.msra.mxu0 0.0
          %544 = vmatprep.subr.mxu0 0.0
          %545 = vmatpush1.msra.mxu0 0.0
          %546 = vmatprep.subr.mxu0 0.0
          %547 = vmatpush1.msra.mxu0 0.0
          %548 = vmatprep.subr.mxu0 0.0
          %549 = vmatpush1.msra.mxu0 0.0
          %550 = vmatprep.mubr.f32.mxu0 0.0
          %551 = vmatmul.mubr.f32.gmra.mrb[0].mxu0 %v462
          %v552 = vpop.f32.mrb[0].mxu0
          %v553 = vadd.f32 %v484, %v552
          %v554 = vpop.f32.mrb[0].mxu0
          %555 = vdwg.mxu0
          %v556 = vsel %vm315, 1, 0
          %vm557 = vcmp.eq.s32.totalorder %v556, 1
          %v558 = vsel %vm557, %v553, 0.0
          %v559 = vld [vmem:[%s7 + $0x2] sm:$0x1]
          %v560 = vrot.slane %v558, 4
          %v561 = vadd.f32 %v558, %v560
          %v562 = vrot.slane %v561, 2
          %v563 = vadd.f32 %v561, %v562
          %v564 = vrot.slane %v563, 1
          %v565 = vadd.f32 %v563, %v564
          %v566 = vadd.f32 %v559, %v565
          %567 = vst [vmem:[%s7 + $0x2] sm:$0x1] %v566
          %v568 = vld [vmem:[%s7 + $0x3] sm:$0x1]
          %v569 = vmul.f32 %v558, %v553
          %v570 = vrot.slane %v569, 4
          %v571 = vadd.f32 %v569, %v570
          %v572 = vrot.slane %v571, 2
          %v573 = vadd.f32 %v571, %v572
          %v574 = vrot.slane %v573, 1
          %v575 = vadd.f32 %v573, %v574
          %v576 = vadd.f32 %v568, %v575
          %577 = vst [vmem:[%s7 + $0x3] sm:$0x1] %v576
        $region68: #{decoder_forward.2} parent=47 // pred_fallthru
          _
        // Predicated region
        $region69: #{decoder_forward.2} parent=47 // pred_check
          %p578 = pneg %p197
        $region70: #{decoder_forward.2} parent=47 // pred_check_branch
          %580 = sbr.rel (%p578) target = $region72
        $region71: #{decoder_forward.2} parent=47 // pred_region
          _
        $region72: #{decoder_forward.2} parent=47 // pred_fallthru
          _
        // Predicated region
        $region73: #{decoder_forward.2} parent=47 // pred_check
          %p581 = pneg %p197
        $region74: #{decoder_forward.2} parent=47 // pred_check_branch
          %583 = sbr.rel (%p581) target = $region76
        $region75: #{decoder_forward.2} parent=47 // pred_region
          _
        $region76: #{decoder_forward.2} parent=47 // pred_fallthru
          _
      $region48: #{decoder_forward.2} parent=5 // pred_fallthru
        _
      %p584 = scmp.le.s32.totalorder 2, %s15
      // Predicated region
      $region77: #{decoder_forward.2} parent=5 // pred_check
        %p585 = pneg %p584
      $region78: #{decoder_forward.2} parent=5 // pred_check_branch
        %587 = sbr.rel (%p585) target = $region80
      $region79: #{decoder_forward.2} parent=5 // pred_region
        %s588 = ssub.s32 %s15, 2
      $region80: #{decoder_forward.2} parent=5 // pred_fallthru
        _
    $region6: #{decoder_forward.2} parent=1 // loop_footer
      %s19 = sadd.s32 1, %s15
    $region7: #{decoder_forward.2} parent=1 // loop_footer_branch
      %14 = sbr.rel target = $region3
    $region8: #{decoder_forward.2} parent=1 // loop_exit
      _
    %589 = vsyncpa [#allocation3], 1
    %s590 = scalar_lea.sflag [#allocation3], 1
    %591 = vsyncpa %s590, 1
    %592 = vsyncpa [#allocation5], 1

// kernel: decoder_forward.3
$region0: #{decoder_forward.3}
  #allocation0 [shape = 'u32[]', space=smem, size = 0x4, offset = 0x4, fixed_abs, tag = 'smem constant byte address 0x4 - core index']
  #allocation1 [shape = 'u32[144,128]{1,0:T(1,128)}', space=vmem, size = 0x12000, scoped, tag = 'internal scratch']
  %s0 = inlined_call_operand.vmem [shape: f32[8,32], index: 0, kind: input, shape index: {}]
  %s1 = inlined_call_operand.vmem [shape: bf16[32,128], index: 1, kind: input, shape index: {}]
  %s2 = inlined_call_operand.vmem [shape: f32[1,128], index: 2, kind: input, shape index: {}]
  %s3 = inlined_call_operand.vmem [shape: bf16[128,128], index: 3, kind: input, shape index: {}]
  %s4 = inlined_call_operand.vmem [shape: f32[1,128], index: 4, kind: input, shape index: {}]
  %s5 = inlined_call_operand.hbm [shape: bf16[128,1024], index: 5, kind: input, shape index: {}]
  %s6 = inlined_call_operand.vmem [shape: f32[1,1024], index: 6, kind: input, shape index: {}]
  %s7 = inlined_call_operand.vmem [shape: f32[8,1024], index: 7, kind: output, shape index: {}]
  %s8 = sld [smem:[#allocation0]]
  $region42: #{decoder_forward.3} parent=0
    _
  %s10 = ssub.s32 1, %s8
  %s11 = scalar_select 0, %s10, %s8
  $region1: #{decoder_forward.3} parent=0
    #allocation2 [shape = 'u8[262144]{0}', space=vmem, size = 0x40000, scoped, tag = 'input window, operand 5, single buffered']
    #allocation3 [shape = 's32[1]{0}', space=sflag, size = 0x4, scoped, tag = 'scoped memory for decoder_forward.3']
    %12 = vsyncpa [#allocation3], 0
    // Predicated region
    $region2: #{decoder_forward.3} parent=1 // pred_check
      _
    $region3: #{decoder_forward.3} parent=1 // pred_check_branch
      %14 = sbr.rel (0) target = $region5
    $region4: #{decoder_forward.3} parent=1 // pred_region
      _
    $region5: #{decoder_forward.3} parent=1 // pred_fallthru
      _
    // Predicated region
    $region6: #{decoder_forward.3} parent=1 // pred_check
      _
    $region7: #{decoder_forward.3} parent=1 // pred_check_branch
      %16 = sbr.rel (0) target = $region9
    $region8: #{decoder_forward.3} parent=1 // pred_region
      _
    $region9: #{decoder_forward.3} parent=1 // pred_fallthru
      _
    // Predicated region
    $region10: #{decoder_forward.3} parent=1 // pred_check
      _
    $region11: #{decoder_forward.3} parent=1 // pred_check_branch
      %18 = sbr.rel (0) target = $region13
    $region12: #{decoder_forward.3} parent=1 // pred_region
      _
    $region13: #{decoder_forward.3} parent=1 // pred_fallthru
      _
    // Predicated region
    $region14: #{decoder_forward.3} parent=1 // pred_check
      _
    $region15: #{decoder_forward.3} parent=1 // pred_check_branch
      %20 = sbr.rel (0) target = $region17
    $region16: #{decoder_forward.3} parent=1 // pred_region
      _
    $region17: #{decoder_forward.3} parent=1 // pred_fallthru
      _
    // Predicated region
    $region18: #{decoder_forward.3} parent=1 // pred_check
      _
    $region19: #{decoder_forward.3} parent=1 // pred_check_branch
      %22 = sbr.rel (0) target = $region21
    $region20: #{decoder_forward.3} parent=1 // pred_region
      _
    $region21: #{decoder_forward.3} parent=1 // pred_fallthru
      _
    // Predicated region
    $region22: #{decoder_forward.3} parent=1 // pred_check
      _
    $region23: #{decoder_forward.3} parent=1 // pred_check_branch
      %24 = sbr.rel (0) target = $region25
    $region24: #{decoder_forward.3} parent=1 // pred_region
      %s26 = ssub.s32 8192, 8192
      %27 = vsyncadd [#allocation3], %s26
      %s28 = sshll.u32 [#allocation2], 4
      %s29 = int_to_ptr.vmem [resolvable:$true] %s28
      %34 = dma.hbm_to_vmem [thread:$0]  %s5, 8192, %s29, [#allocation3], 512, 512, 32
    $region25: #{decoder_forward.3} parent=1 // pred_fallthru
      _
    // Predicated region
    $region26: #{decoder_forward.3} parent=1 // pred_check
      _
    $region27: #{decoder_forward.3} parent=1 // pred_check_branch
      %36 = sbr.rel (0) target = $region29
    $region28: #{decoder_forward.3} parent=1 // pred_region
      _
    $region29: #{decoder_forward.3} parent=1 // pred_fallthru
      _
    // Predicated region
    $region30: #{decoder_forward.3} parent=1 // pred_check
      _
    $region31: #{decoder_forward.3} parent=1 // pred_check_branch
      %38 = sbr.rel (0) target = $region33
    $region32: #{decoder_forward.3} parent=1 // pred_region
      %39 = dma.done [#allocation3], 8192
    $region33: #{decoder_forward.3} parent=1 // pred_fallthru
      _
    %v41 = vld [vmem:[%s0] sm:$0xff]
    %v42 = vpack.c.bf16 %v41, %v41
    %v43 = vld [vmem:[%s1] sm:$0xf]
    %v44 = vld [vmem:[%s1 + $0x4] sm:$0xf]
    %v45 = vld [vmem:[%s1 + $0x8] sm:$0xf]
    %v46 = vld [vmem:[%s1 + $0xc] sm:$0xf]
    %v47 = vld [vmem:[%s2] sm:$0x1]
    %v49 = vlaneseq
    %v50 = vshrl.u32 %v49, 7
    %v51 = vsub.s32 0, %v50
    %v52 = vrot.slane %v47, %v51
    %v58 = vunpack.c.l.b16 %v43
    %v59 = vunpack.c.l.b16 %v44
    %v60 = vunpack.c.l.b16 %v45
    %v61 = vunpack.c.l.b16 %v46
    %v62 = vpack.c.b16 %v59, %v58
    %v63 = vpack.c.b16 %v61, %v60
    %vm66 = vcmask 261120
    %v68 = vsel %vm66, %v42, 0
    %70 = vmatprep.subr.bf16.mxu0 0
    %71 = vmatpush1.bf16.msra.mxu0 %v62
    %72 = vmatprep.subr.bf16.mxu0 0
    %73 = vmatpush1.bf16.msra.mxu0 %v63
    %74 = vmatprep.subr.bf16.mxu0 0
    %75 = vmatpush1.bf16.msra.mxu0 0
    %76 = vmatprep.subr.bf16.mxu0 0
    %77 = vmatpush1.bf16.msra.mxu0 0
    %78 = vmatprep.subr.bf16.mxu0 0
    %79 = vmatpush1.bf16.msra.mxu0 0
    %80 = vmatprep.subr.bf16.mxu0 0
    %81 = vmatpush1.bf16.msra.mxu0 0
    %82 = vmatprep.subr.bf16.mxu0 0
    %83 = vmatpush1.bf16.msra.mxu0 0
    %84 = vmatprep.subr.bf16.mxu0 0
    %85 = vmatpush1.bf16.msra.mxu0 0
    %86 = vmatprep.subr.bf16.mxu0 0
    %87 = vmatpush1.bf16.msra.mxu0 0
    %88 = vmatprep.subr.bf16.mxu0 0
    %89 = vmatpush1.bf16.msra.mxu0 0
    %90 = vmatprep.subr.bf16.mxu0 0
    %91 = vmatpush1.bf16.msra.mxu0 0
    %92 = vmatprep.subr.bf16.mxu0 0
    %93 = vmatpush1.bf16.msra.mxu0 0
    %94 = vmatprep.subr.bf16.mxu0 0
    %95 = vmatpush1.bf16.msra.mxu0 0
    %96 = vmatprep.subr.bf16.mxu0 0
    %97 = vmatpush1.bf16.msra.mxu0 0
    %98 = vmatprep.subr.bf16.mxu0 0
    %99 = vmatpush1.bf16.msra.mxu0 0
    %100 = vmatprep.subr.bf16.mxu0 0
    %101 = vmatpush1.bf16.msra.mxu0 0
    %102 = vmatprep.mubr.bf16.mxu0 0
    %103 = vmatmul.mubr.bf16.gmra.mrb[0].mxu0 %v68
    %v104 = vpop.f32.mrb[0].mxu0
    %v105 = vadd.f32 %v52, %v104
    %v106 = vpop.f32.mrb[0].mxu0
    %v107 = vpop.f32.mrb[0].mxu0
    %v108 = vpop.f32.mrb[0].mxu0
    %109 = vdwg.mxu0
    %v110 = vmax.f32 %v105, 0.0
    %v111 = vpack.c.bf16 %v110, %v110
    %v112 = vld [vmem:[%s3] sm:$0xf]
    %v113 = vld [vmem:[%s3 + $0x4] sm:$0xf]
    %v114 = vld [vmem:[%s3 + $0x8] sm:$0xf]
    %v115 = vld [vmem:[%s3 + $0xc] sm:$0xf]
    %v116 = vld [vmem:[%s3 + $0x10] sm:$0xf]
    %v117 = vld [vmem:[%s3 + $0x14] sm:$0xf]
    %v118 = vld [vmem:[%s3 + $0x18] sm:$0xf]
    %v119 = vld [vmem:[%s3 + $0x1c] sm:$0xf]
    %v120 = vld [vmem:[%s3 + $0x20] sm:$0xf]
    %v121 = vld [vmem:[%s3 + $0x24] sm:$0xf]
    %v122 = vld [vmem:[%s3 + $0x28] sm:$0xf]
    %v123 = vld [vmem:[%s3 + $0x2c] sm:$0xf]
    %v124 = vld [vmem:[%s3 + $0x30] sm:$0xf]
    %v125 = vld [vmem:[%s3 + $0x34] sm:$0xf]
    %v126 = vld [vmem:[%s3 + $0x38] sm:$0xf]
    %v127 = vld [vmem:[%s3 + $0x3c] sm:$0xf]
    %v128 = vld [vmem:[%s4] sm:$0x1]
    %v130 = vlaneseq
    %v131 = vshrl.u32 %v130, 7
    %v132 = vsub.s32 0, %v131
    %v133 = vrot.slane %v128, %v132
    %v151 = vunpack.c.l.b16 %v112
    %v152 = vunpack.c.l.b16 %v113
    %v153 = vunpack.c.l.b16 %v114
    %v154 = vunpack.c.l.b16 %v115
    %v155 = vunpack.c.l.b16 %v116
    %v156 = vunpack.c.l.b16 %v117
    %v157 = vunpack.c.l.b16 %v118
    %v158 = vunpack.c.l.b16 %v119
    %v159 = vunpack.c.l.b16 %v120
    %v160 = vunpack.c.l.b16 %v121
    %v161 = vunpack.c.l.b16 %v122
    %v162 = vunpack.c.l.b16 %v123
    %v163 = vunpack.c.l.b16 %v124
    %v164 = vunpack.c.l.b16 %v125
    %v165 = vunpack.c.l.b16 %v126
    %v166 = vunpack.c.l.b16 %v127
    %v167 = vpack.c.b16 %v152, %v151
    %v168 = vpack.c.b16 %v154, %v153
    %v169 = vpack.c.b16 %v156, %v155
    %v170 = vpack.c.b16 %v158, %v157
    %v171 = vpack.c.b16 %v160, %v159
    %v172 = vpack.c.b16 %v162, %v161
    %v173 = vpack.c.b16 %v164, %v163
    %v174 = vpack.c.b16 %v166, %v165
    %183 = vmatprep.subr.bf16.mxu0 0
    %184 = vmatpush1.bf16.msra.mxu0 %v167
    %185 = vmatprep.subr.bf16.mxu0 0
    %186 = vmatpush1.bf16.msra.mxu0 %v168
    %187 = vmatprep.subr.bf16.mxu0 0
    %188 = vmatpush1.bf16.msra.mxu0 %v169
    %189 = vmatprep.subr.bf16.mxu0 0
    %190 = vmatpush1.bf16.msra.mxu0 %v170
    %191 = vmatprep.subr.bf16.mxu0 0
    %192 = vmatpush1.bf16.msra.mxu0 %v171
    %193 = vmatprep.subr.bf16.mxu0 0
    %194 = vmatpush1.bf16.msra.mxu0 %v172
    %195 = vmatprep.subr.bf16.mxu0 0
    %196 = vmatpush1.bf16.msra.mxu0 %v173
    %197 = vmatprep.subr.bf16.mxu0 0
    %198 = vmatpush1.bf16.msra.mxu0 %v174
    %199 = vmatprep.subr.bf16.mxu0 0
    %200 = vmatpush1.bf16.msra.mxu0 0
    %201 = vmatprep.subr.bf16.mxu0 0
    %202 = vmatpush1.bf16.msra.mxu0 0
    %203 = vmatprep.subr.bf16.mxu0 0
    %204 = vmatpush1.bf16.msra.mxu0 0
    %205 = vmatprep.subr.bf16.mxu0 0
    %206 = vmatpush1.bf16.msra.mxu0 0
    %207 = vmatprep.subr.bf16.mxu0 0
    %208 = vmatpush1.bf16.msra.mxu0 0
    %209 = vmatprep.subr.bf16.mxu0 0
    %210 = vmatpush1.bf16.msra.mxu0 0
    %211 = vmatprep.subr.bf16.mxu0 0
    %212 = vmatpush1.bf16.msra.mxu0 0
    %213 = vmatprep.subr.bf16.mxu0 0
    %214 = vmatpush1.bf16.msra.mxu0 0
    %215 = vmatprep.mubr.bf16.mxu0 0
    %216 = vmatmul.mubr.bf16.gmra.mrb[0].mxu0 %v111
    %v217 = vpop.f32.mrb[0].mxu0
    %v218 = vadd.f32 %v133, %v217
    %v219 = vpop.f32.mrb[0].mxu0
    %v220 = vpop.f32.mrb[0].mxu0
    %v221 = vpop.f32.mrb[0].mxu0
    %222 = vdwg.mxu0
    %v223 = vmax.f32 %v218, 0.0
    %v224 = vpack.c.bf16 %v223, %v223
    %v225 = vld [vmem:[#allocation2] sm:$0xff]
    %v226 = vld [vmem:[#allocation2 + $0x8] sm:$0xff]
    %v227 = vld [vmem:[#allocation2 + $0x10] sm:$0xff]
    %v228 = vld [vmem:[#allocation2 + $0x18] sm:$0xff]
    %v229 = vld [vmem:[#allocation2 + $0x20] sm:$0xff]
    %v230 = vld [vmem:[#allocation2 + $0x28] sm:$0xff]
    %v231 = vld [vmem:[#allocation2 + $0x30] sm:$0xff]
    %v232 = vld [vmem:[#allocation2 + $0x38] sm:$0xff]
    %v233 = vld [vmem:[#allocation2 + $0x40] sm:$0xff]
    %v234 = vld [vmem:[#allocation2 + $0x48] sm:$0xff]
    %v235 = vld [vmem:[#allocation2 + $0x50] sm:$0xff]
    %v236 = vld [vmem:[#allocation2 + $0x58] sm:$0xff]
    %v237 = vld [vmem:[#allocation2 + $0x60] sm:$0xff]
    %v238 = vld [vmem:[#allocation2 + $0x68] sm:$0xff]
    %v239 = vld [vmem:[#allocation2 + $0x70] sm:$0xff]
    %v240 = vld [vmem:[#allocation2 + $0x78] sm:$0xff]
    %v241 = vld [vmem:[#allocation2 + $0x80] sm:$0xff]
    %v242 = vld [vmem:[#allocation2 + $0x88] sm:$0xff]
    %v243 = vld [vmem:[#allocation2 + $0x90] sm:$0xff]
    %v244 = vld [vmem:[#allocation2 + $0x98] sm:$0xff]
    %v245 = vld [vmem:[#allocation2 + $0xa0] sm:$0xff]
    %v246 = vld [vmem:[#allocation2 + $0xa8] sm:$0xff]
    %v247 = vld [vmem:[#allocation2 + $0xb0] sm:$0xff]
    %v248 = vld [vmem:[#allocation2 + $0xb8] sm:$0xff]
    %v249 = vld [vmem:[#allocation2 + $0xc0] sm:$0xff]
    %v250 = vld [vmem:[#allocation2 + $0xc8] sm:$0xff]
    %v251 = vld [vmem:[#allocation2 + $0xd0] sm:$0xff]
    %v252 = vld [vmem:[#allocation2 + $0xd8] sm:$0xff]
    %v253 = vld [vmem:[#allocation2 + $0xe0] sm:$0xff]
    %v254 = vld [vmem:[#allocation2 + $0xe8] sm:$0xff]
    %v255 = vld [vmem:[#allocation2 + $0xf0] sm:$0xff]
    %v256 = vld [vmem:[#allocation2 + $0xf8] sm:$0xff]
    %v257 = vld [vmem:[#allocation2 + $0x100] sm:$0xff]
    %v258 = vld [vmem:[#allocation2 + $0x108] sm:$0xff]
    %v259 = vld [vmem:[#allocation2 + $0x110] sm:$0xff]
    %v260 = vld [vmem:[#allocation2 + $0x118] sm:$0xff]
    %v261 = vld [vmem:[#allocation2 + $0x120] sm:$0xff]
    %v262 = vld [vmem:[#allocation2 + $0x128] sm:$0xff]
    %v263 = vld [vmem:[#allocation2 + $0x130] sm:$0xff]
    %v264 = vld [vmem:[#allocation2 + $0x138] sm:$0xff]
    %v265 = vld [vmem:[#allocation2 + $0x140] sm:$0xff]
    %v266 = vld [vmem:[#allocation2 + $0x148] sm:$0xff]
    %v267 = vld [vmem:[#allocation2 + $0x150] sm:$0xff]
    %v268 = vld [vmem:[#allocation2 + $0x158] sm:$0xff]
    %v269 = vld [vmem:[#allocation2 + $0x160] sm:$0xff]
    %v270 = vld [vmem:[#allocation2 + $0x168] sm:$0xff]
    %v271 = vld [vmem:[#allocation2 + $0x170] sm:$0xff]
    %v272 = vld [vmem:[#allocation2 + $0x178] sm:$0xff]
    %v273 = vld [vmem:[#allocation2 + $0x180] sm:$0xff]
    %v274 = vld [vmem:[#allocation2 + $0x188] sm:$0xff]
    %v275 = vld [vmem:[#allocation2 + $0x190] sm:$0xff]
    %v276 = vld [vmem:[#allocation2 + $0x198] sm:$0xff]
    %v277 = vld [vmem:[#allocation2 + $0x1a0] sm:$0xff]
    %v278 = vld [vmem:[#allocation2 + $0x1a8] sm:$0xff]
    %v279 = vld [vmem:[#allocation2 + $0x1b0] sm:$0xff]
    %v280 = vld [vmem:[#allocation2 + $0x1b8] sm:$0xff]
    %v281 = vld [vmem:[#allocation2 + $0x1c0] sm:$0xff]
    %v282 = vld [vmem:[#allocation2 + $0x1c8] sm:$0xff]
    %v283 = vld [vmem:[#allocation2 + $0x1d0] sm:$0xff]
    %v284 = vld [vmem:[#allocation2 + $0x1d8] sm:$0xff]
    %v285 = vld [vmem:[#allocation2 + $0x1e0] sm:$0xff]
    %v286 = vld [vmem:[#allocation2 + $0x1e8] sm:$0xff]
    %v287 = vld [vmem:[#allocation2 + $0x1f0] sm:$0xff]
    %v288 = vld [vmem:[#allocation2 + $0x1f8] sm:$0xff]
    %v289 = vld [vmem:[%s6] sm:$0xff]
    %v291 = vlaneseq
    %v292 = vshrl.u32 %v291, 7
    %v293 = vsub.s32 0, %v292
    %v294 = vrot.slane %v289, %v293
    %v295 = vlaneseq
    %v296 = vshrl.u32 %v295, 7
    %v297 = vsub.s32 1, %v296
    %v298 = vrot.slane %v289, %v297
    %v299 = vlaneseq
    %v300 = vshrl.u32 %v299, 7
    %v301 = vsub.s32 2, %v300
    %v302 = vrot.slane %v289, %v301
    %v303 = vlaneseq
    %v304 = vshrl.u32 %v303, 7
    %v305 = vsub.s32 3, %v304
    %v306 = vrot.slane %v289, %v305
    %v307 = vlaneseq
    %v308 = vshrl.u32 %v307, 7
    %v309 = vsub.s32 4, %v308
    %v310 = vrot.slane %v289, %v309
    %v311 = vlaneseq
    %v312 = vshrl.u32 %v311, 7
    %v313 = vsub.s32 5, %v312
    %v314 = vrot.slane %v289, %v313
    %v315 = vlaneseq
    %v316 = vshrl.u32 %v315, 7
    %v317 = vsub.s32 6, %v316
    %v318 = vrot.slane %v289, %v317
    %v319 = vlaneseq
    %v320 = vshrl.u32 %v319, 7
    %v321 = vsub.s32 7, %v320
    %v322 = vrot.slane %v289, %v321
    %v395 = vunpack.c.l.b16 %v225
    %v396 = vunpack.c.h.b16 %v225
    %v397 = vunpack.c.l.b16 %v226
    %v398 = vunpack.c.h.b16 %v226
    %v399 = vunpack.c.l.b16 %v227
    %v400 = vunpack.c.h.b16 %v227
    %v401 = vunpack.c.l.b16 %v228
    %v402 = vunpack.c.h.b16 %v228
    %v403 = vunpack.c.l.b16 %v229
    %v404 = vunpack.c.h.b16 %v229
    %v405 = vunpack.c.l.b16 %v230
    %v406 = vunpack.c.h.b16 %v230
    %v407 = vunpack.c.l.b16 %v231
    %v408 = vunpack.c.h.b16 %v231
    %v409 = vunpack.c.l.b16 %v232
    %v410 = vunpack.c.h.b16 %v232
    %v411 = vunpack.c.l.b16 %v233
    %v412 = vunpack.c.h.b16 %v233
    %v413 = vunpack.c.l.b16 %v234
    %v414 = vunpack.c.h.b16 %v234
    %v415 = vunpack.c.l.b16 %v235
    %v416 = vunpack.c.h.b16 %v235
    %v417 = vunpack.c.l.b16 %v236
    %v418 = vunpack.c.h.b16 %v236
    %v419 = vunpack.c.l.b16 %v237
    %v420 = vunpack.c.h.b16 %v237
    %v421 = vunpack.c.l.b16 %v238
    %v422 = vunpack.c.h.b16 %v238
    %v423 = vunpack.c.l.b16 %v239
    %v424 = vunpack.c.h.b16 %v239
    %v425 = vunpack.c.l.b16 %v240
    %v426 = vunpack.c.h.b16 %v240
    %v427 = vunpack.c.l.b16 %v241
    %v428 = vunpack.c.h.b16 %v241
    %v429 = vunpack.c.l.b16 %v242
    %v430 = vunpack.c.h.b16 %v242
    %v431 = vunpack.c.l.b16 %v243
    %v432 = vunpack.c.h.b16 %v243
    %v433 = vunpack.c.l.b16 %v244
    %v434 = vunpack.c.h.b16 %v244
    %v435 = vunpack.c.l.b16 %v245
    %v436 = vunpack.c.h.b16 %v245
    %v437 = vunpack.c.l.b16 %v246
    %v438 = vunpack.c.h.b16 %v246
    %v439 = vunpack.c.l.b16 %v247
    %v440 = vunpack.c.h.b16 %v247
    %v441 = vunpack.c.l.b16 %v248
    %v442 = vunpack.c.h.b16 %v248
    %v443 = vunpack.c.l.b16 %v249
    %v444 = vunpack.c.h.b16 %v249
    %v445 = vunpack.c.l.b16 %v250
    %v446 = vunpack.c.h.b16 %v250
    %v447 = vunpack.c.l.b16 %v251
    %v448 = vunpack.c.h.b16 %v251
    %v449 = vunpack.c.l.b16 %v252
    %v450 = vunpack.c.h.b16 %v252
    %v451 = vunpack.c.l.b16 %v253
    %v452 = vunpack.c.h.b16 %v253
    %v453 = vunpack.c.l.b16 %v254
    %v454 = vunpack.c.h.b16 %v254
    %v455 = vunpack.c.l.b16 %v255
    %v456 = vunpack.c.h.b16 %v255
    %v457 = vunpack.c.l.b16 %v256
    %v458 = vunpack.c.h.b16 %v256
    %v459 = vunpack.c.l.b16 %v257
    %v460 = vunpack.c.h.b16 %v257
    %v461 = vunpack.c.l.b16 %v258
    %v462 = vunpack.c.h.b16 %v258
    %v463 = vunpack.c.l.b16 %v259
    %v464 = vunpack.c.h.b16 %v259
    %v465 = vunpack.c.l.b16 %v260
    %v466 = vunpack.c.h.b16 %v260
    %v467 = vunpack.c.l.b16 %v261
    %v468 = vunpack.c.h.b16 %v261
    %v469 = vunpack.c.l.b16 %v262
    %v470 = vunpack.c.h.b16 %v262
    %v471 = vunpack.c.l.b16 %v263
    %v472 = vunpack.c.h.b16 %v263
    %v473 = vunpack.c.l.b16 %v264
    %v474 = vunpack.c.h.b16 %v264
    %v475 = vunpack.c.l.b16 %v265
    %v476 = vunpack.c.h.b16 %v265
    %v477 = vunpack.c.l.b16 %v266
    %v478 = vunpack.c.h.b16 %v266
    %v479 = vunpack.c.l.b16 %v267
    %v480 = vunpack.c.h.b16 %v267
    %v481 = vunpack.c.l.b16 %v268
    %v482 = vunpack.c.h.b16 %v268
    %v483 = vunpack.c.l.b16 %v269
    %v484 = vunpack.c.h.b16 %v269
    %v485 = vunpack.c.l.b16 %v270
    %v486 = vunpack.c.h.b16 %v270
    %v487 = vunpack.c.l.b16 %v271
    %v488 = vunpack.c.h.b16 %v271
    %v489 = vunpack.c.l.b16 %v272
    %v490 = vunpack.c.h.b16 %v272
    %v491 = vunpack.c.l.b16 %v273
    %v492 = vunpack.c.h.b16 %v273
    %v493 = vunpack.c.l.b16 %v274
    %v494 = vunpack.c.h.b16 %v274
    %v495 = vunpack.c.l.b16 %v275
    %v496 = vunpack.c.h.b16 %v275
    %v497 = vunpack.c.l.b16 %v276
    %v498 = vunpack.c.h.b16 %v276
    %v499 = vunpack.c.l.b16 %v277
    %v500 = vunpack.c.h.b16 %v277
    %v501 = vunpack.c.l.b16 %v278
    %v502 = vunpack.c.h.b16 %v278
    %v503 = vunpack.c.l.b16 %v279
    %v504 = vunpack.c.h.b16 %v279
    %v505 = vunpack.c.l.b16 %v280
    %v506 = vunpack.c.h.b16 %v280
    %v507 = vunpack.c.l.b16 %v281
    %v508 = vunpack.c.h.b16 %v281
    %v509 = vunpack.c.l.b16 %v282
    %v510 = vunpack.c.h.b16 %v282
    %v511 = vunpack.c.l.b16 %v283
    %v512 = vunpack.c.h.b16 %v283
    %v513 = vunpack.c.l.b16 %v284
    %v514 = vunpack.c.h.b16 %v284
    %v515 = vunpack.c.l.b16 %v285
    %v516 = vunpack.c.h.b16 %v285
    %v517 = vunpack.c.l.b16 %v286
    %v518 = vunpack.c.h.b16 %v286
    %v519 = vunpack.c.l.b16 %v287
    %v520 = vunpack.c.h.b16 %v287
    %v521 = vunpack.c.l.b16 %v288
    %v522 = vunpack.c.h.b16 %v288
    %v523 = vpack.c.b16 %v403, %v395
    %v524 = vpack.c.b16 %v404, %v396
    %v525 = vpack.c.b16 %v405, %v397
    %v526 = vpack.c.b16 %v406, %v398
    %v527 = vpack.c.b16 %v407, %v399
    %v528 = vpack.c.b16 %v408, %v400
    %v529 = vpack.c.b16 %v409, %v401
    %v530 = vpack.c.b16 %v410, %v402
    %v531 = vpack.c.b16 %v419, %v411
    %v532 = vpack.c.b16 %v420, %v412
    %v533 = vpack.c.b16 %v421, %v413
    %v534 = vpack.c.b16 %v422, %v414
    %v535 = vpack.c.b16 %v423, %v415
    %v536 = vpack.c.b16 %v424, %v416
    %v537 = vpack.c.b16 %v425, %v417
    %v538 = vpack.c.b16 %v426, %v418
    %v539 = vpack.c.b16 %v435, %v427
    %v540 = vpack.c.b16 %v436, %v428
    %v541 = vpack.c.b16 %v437, %v429
    %v542 = vpack.c.b16 %v438, %v430
    %v543 = vpack.c.b16 %v439, %v431
    %v544 = vpack.c.b16 %v440, %v432
    %v545 = vpack.c.b16 %v441, %v433
    %v546 = vpack.c.b16 %v442, %v434
    %v547 = vpack.c.b16 %v451, %v443
    %v548 = vpack.c.b16 %v452, %v444
    %v549 = vpack.c.b16 %v453, %v445
    %v550 = vpack.c.b16 %v454, %v446
    %v551 = vpack.c.b16 %v455, %v447
    %v552 = vpack.c.b16 %v456, %v448
    %v553 = vpack.c.b16 %v457, %v449
    %v554 = vpack.c.b16 %v458, %v450
    %v555 = vpack.c.b16 %v467, %v459
    %v556 = vpack.c.b16 %v468, %v460
    %v557 = vpack.c.b16 %v469, %v461
    %v558 = vpack.c.b16 %v470, %v462
    %v559 = vpack.c.b16 %v471, %v463
    %v560 = vpack.c.b16 %v472, %v464
    %v561 = vpack.c.b16 %v473, %v465
    %v562 = vpack.c.b16 %v474, %v466
    %v563 = vpack.c.b16 %v483, %v475
    %v564 = vpack.c.b16 %v484, %v476
    %v565 = vpack.c.b16 %v485, %v477
    %v566 = vpack.c.b16 %v486, %v478
    %v567 = vpack.c.b16 %v487, %v479
    %v568 = vpack.c.b16 %v488, %v480
    %v569 = vpack.c.b16 %v489, %v481
    %v570 = vpack.c.b16 %v490, %v482
    %v571 = vpack.c.b16 %v499, %v491
    %v572 = vpack.c.b16 %v500, %v492
    %v573 = vpack.c.b16 %v501, %v493
    %v574 = vpack.c.b16 %v502, %v494
    %v575 = vpack.c.b16 %v503, %v495
    %v576 = vpack.c.b16 %v504, %v496
    %v577 = vpack.c.b16 %v505, %v497
    %v578 = vpack.c.b16 %v506, %v498
    %v579 = vpack.c.b16 %v515, %v507
    %v580 = vpack.c.b16 %v516, %v508
    %v581 = vpack.c.b16 %v517, %v509
    %v582 = vpack.c.b16 %v518, %v510
    %v583 = vpack.c.b16 %v519, %v511
    %v584 = vpack.c.b16 %v520, %v512
    %v585 = vpack.c.b16 %v521, %v513
    %v586 = vpack.c.b16 %v522, %v514
    %651 = vmatprep.subr.bf16.mxu0 %v524
    %652 = vmatpush1.bf16.msra.mxu0 %v523
    %653 = vmatprep.subr.bf16.mxu0 %v532
    %654 = vmatpush1.bf16.msra.mxu0 %v531
    %655 = vmatprep.subr.bf16.mxu0 %v540
    %656 = vmatpush1.bf16.msra.mxu0 %v539
    %657 = vmatprep.subr.bf16.mxu0 %v548
    %658 = vmatpush1.bf16.msra.mxu0 %v547
    %659 = vmatprep.subr.bf16.mxu0 %v556
    %660 = vmatpush1.bf16.msra.mxu0 %v555
    %661 = vmatprep.subr.bf16.mxu0 %v564
    %662 = vmatpush1.bf16.msra.mxu0 %v563
    %663 = vmatprep.subr.bf16.mxu0 %v572
    %664 = vmatpush1.bf16.msra.mxu0 %v571
    %665 = vmatprep.subr.bf16.mxu0 %v580
    %666 = vmatpush1.bf16.msra.mxu0 %v579
    %667 = vmatprep.subr.bf16.mxu0 0
    %668 = vmatpush1.bf16.msra.mxu0 0
    %669 = vmatprep.subr.bf16.mxu0 0
    %670 = vmatpush1.bf16.msra.mxu0 0
    %671 = vmatprep.subr.bf16.mxu0 0
    %672 = vmatpush1.bf16.msra.mxu0 0
    %673 = vmatprep.subr.bf16.mxu0 0
    %674 = vmatpush1.bf16.msra.mxu0 0
    %675 = vmatprep.subr.bf16.mxu0 0
    %676 = vmatpush1.bf16.msra.mxu0 0
    %677 = vmatprep.subr.bf16.mxu0 0
    %678 = vmatpush1.bf16.msra.mxu0 0
    %679 = vmatprep.subr.bf16.mxu0 0
    %680 = vmatpush1.bf16.msra.mxu0 0
    %681 = vmatprep.subr.bf16.mxu0 0
    %682 = vmatpush1.bf16.msra.mxu0 0
    %683 = vmatprep.mubr.bf16.mxu0 0
    %684 = vmatmul.mubr.bf16.gmra.mrb[0].mxu0 %v224
    %v685 = vpop.f32.mrb[0].mxu0
    %v686 = vadd.f32 %v294, %v685
    %v687 = vpop.f32.mrb[0].mxu0
    %v688 = vadd.f32 %v298, %v687
    %v689 = vpop.f32.mrb[0].mxu0
    %v690 = vpop.f32.mrb[0].mxu0
    %691 = vdwg.mxu0
    %692 = vmatprep.subr.bf16.mxu0 %v526
    %693 = vmatpush1.bf16.msra.mxu0 %v525
    %694 = vmatprep.subr.bf16.mxu0 %v534
    %695 = vmatpush1.bf16.msra.mxu0 %v533
    %696 = vmatprep.subr.bf16.mxu0 %v542
    %697 = vmatpush1.bf16.msra.mxu0 %v541
    %698 = vmatprep.subr.bf16.mxu0 %v550
    %699 = vmatpush1.bf16.msra.mxu0 %v549
    %700 = vmatprep.subr.bf16.mxu0 %v558
    %701 = vmatpush1.bf16.msra.mxu0 %v557
    %702 = vmatprep.subr.bf16.mxu0 %v566
    %703 = vmatpush1.bf16.msra.mxu0 %v565
    %704 = vmatprep.subr.bf16.mxu0 %v574
    %705 = vmatpush1.bf16.msra.mxu0 %v573
    %706 = vmatprep.subr.bf16.mxu0 %v582
    %707 = vmatpush1.bf16.msra.mxu0 %v581
    %708 = vmatprep.subr.bf16.mxu0 0
    %709 = vmatpush1.bf16.msra.mxu0 0
    %710 = vmatprep.subr.bf16.mxu0 0
    %711 = vmatpush1.bf16.msra.mxu0 0
    %712 = vmatprep.subr.bf16.mxu0 0
    %713 = vmatpush1.bf16.msra.mxu0 0
    %714 = vmatprep.subr.bf16.mxu0 0
    %715 = vmatpush1.bf16.msra.mxu0 0
    %716 = vmatprep.subr.bf16.mxu0 0
    %717 = vmatpush1.bf16.msra.mxu0 0
    %718 = vmatprep.subr.bf16.mxu0 0
    %719 = vmatpush1.bf16.msra.mxu0 0
    %720 = vmatprep.subr.bf16.mxu0 0
    %721 = vmatpush1.bf16.msra.mxu0 0
    %722 = vmatprep.subr.bf16.mxu0 0
    %723 = vmatpush1.bf16.msra.mxu0 0
    %724 = vmatprep.mubr.bf16.mxu0 0
    %725 = vmatmul.mubr.bf16.gmra.mrb[0].mxu0 %v224
    %v726 = vpop.f32.mrb[0].mxu0
    %v727 = vadd.f32 %v302, %v726
    %v728 = vpop.f32.mrb[0].mxu0
    %v729 = vadd.f32 %v306, %v728
    %v730 = vpop.f32.mrb[0].mxu0
    %v731 = vpop.f32.mrb[0].mxu0
    %732 = vdwg.mxu0
    %733 = vmatprep.subr.bf16.mxu0 %v528
    %734 = vmatpush1.bf16.msra.mxu0 %v527
    %735 = vmatprep.subr.bf16.mxu0 %v536
    %736 = vmatpush1.bf16.msra.mxu0 %v535
    %737 = vmatprep.subr.bf16.mxu0 %v544
    %738 = vmatpush1.bf16.msra.mxu0 %v543
    %739 = vmatprep.subr.bf16.mxu0 %v552
    %740 = vmatpush1.bf16.msra.mxu0 %v551
    %741 = vmatprep.subr.bf16.mxu0 %v560
    %742 = vmatpush1.bf16.msra.mxu0 %v559
    %743 = vmatprep.subr.bf16.mxu0 %v568
    %744 = vmatpush1.bf16.msra.mxu0 %v567
    %745 = vmatprep.subr.bf16.mxu0 %v576
    %746 = vmatpush1.bf16.msra.mxu0 %v575
    %747 = vmatprep.subr.bf16.mxu0 %v584
    %748 = vmatpush1.bf16.msra.mxu0 %v583
    %749 = vmatprep.subr.bf16.mxu0 0
    %750 = vmatpush1.bf16.msra.mxu0 0
    %751 = vmatprep.subr.bf16.mxu0 0
    %752 = vmatpush1.bf16.msra.mxu0 0
    %753 = vmatprep.subr.bf16.mxu0 0
    %754 = vmatpush1.bf16.msra.mxu0 0
    %755 = vmatprep.subr.bf16.mxu0 0
    %756 = vmatpush1.bf16.msra.mxu0 0
    %757 = vmatprep.subr.bf16.mxu0 0
    %758 = vmatpush1.bf16.msra.mxu0 0
    %759 = vmatprep.subr.bf16.mxu0 0
    %760 = vmatpush1.bf16.msra.mxu0 0
    %761 = vmatprep.subr.bf16.mxu0 0
    %762 = vmatpush1.bf16.msra.mxu0 0
    %763 = vmatprep.subr.bf16.mxu0 0
    %764 = vmatpush1.bf16.msra.mxu0 0
    %765 = vmatprep.mubr.bf16.mxu0 0
    %766 = vmatmul.mubr.bf16.gmra.mrb[0].mxu0 %v224
    %v767 = vpop.f32.mrb[0].mxu0
    %v768 = vadd.f32 %v310, %v767
    %v769 = vpop.f32.mrb[0].mxu0
    %v770 = vadd.f32 %v314, %v769
    %v771 = vpop.f32.mrb[0].mxu0
    %v772 = vpop.f32.mrb[0].mxu0
    %773 = vdwg.mxu0
    %774 = vmatprep.subr.bf16.mxu0 %v530
    %775 = vmatpush1.bf16.msra.mxu0 %v529
    %776 = vmatprep.subr.bf16.mxu0 %v538
    %777 = vmatpush1.bf16.msra.mxu0 %v537
    %778 = vmatprep.subr.bf16.mxu0 %v546
    %779 = vmatpush1.bf16.msra.mxu0 %v545
    %780 = vmatprep.subr.bf16.mxu0 %v554
    %781 = vmatpush1.bf16.msra.mxu0 %v553
    %782 = vmatprep.subr.bf16.mxu0 %v562
    %783 = vmatpush1.bf16.msra.mxu0 %v561
    %784 = vmatprep.subr.bf16.mxu0 %v570
    %785 = vmatpush1.bf16.msra.mxu0 %v569
    %786 = vmatprep.subr.bf16.mxu0 %v578
    %787 = vmatpush1.bf16.msra.mxu0 %v577
    %788 = vmatprep.subr.bf16.mxu0 %v586
    %789 = vmatpush1.bf16.msra.mxu0 %v585
    %790 = vmatprep.subr.bf16.mxu0 0
    %791 = vmatpush1.bf16.msra.mxu0 0
    %792 = vmatprep.subr.bf16.mxu0 0
    %793 = vmatpush1.bf16.msra.mxu0 0
    %794 = vmatprep.subr.bf16.mxu0 0
    %795 = vmatpush1.bf16.msra.mxu0 0
    %796 = vmatprep.subr.bf16.mxu0 0
    %797 = vmatpush1.bf16.msra.mxu0 0
    %798 = vmatprep.subr.bf16.mxu0 0
    %799 = vmatpush1.bf16.msra.mxu0 0
    %800 = vmatprep.subr.bf16.mxu0 0
    %801 = vmatpush1.bf16.msra.mxu0 0
    %802 = vmatprep.subr.bf16.mxu0 0
    %803 = vmatpush1.bf16.msra.mxu0 0
    %804 = vmatprep.subr.bf16.mxu0 0
    %805 = vmatpush1.bf16.msra.mxu0 0
    %806 = vmatprep.mubr.bf16.mxu0 0
    %807 = vmatmul.mubr.bf16.gmra.mrb[0].mxu0 %v224
    %v808 = vpop.f32.mrb[0].mxu0
    %v809 = vadd.f32 %v318, %v808
    %v810 = vpop.f32.mrb[0].mxu0
    %v811 = vadd.f32 %v322, %v810
    %v812 = vpop.f32.mrb[0].mxu0
    %v813 = vpop.f32.mrb[0].mxu0
    %814 = vdwg.mxu0
    %815 = vst [vmem:[%s7] sm:$0xff] %v686
    %816 = vst [vmem:[%s7 + $0x8] sm:$0xff] %v688
    %817 = vst [vmem:[%s7 + $0x10] sm:$0xff] %v727
    %818 = vst [vmem:[%s7 + $0x18] sm:$0xff] %v729
    %819 = vst [vmem:[%s7 + $0x20] sm:$0xff] %v768
    %820 = vst [vmem:[%s7 + $0x28] sm:$0xff] %v770
    %821 = vst [vmem:[%s7 + $0x30] sm:$0xff] %v809
    %822 = vst [vmem:[%s7 + $0x38] sm:$0xff] %v811
    // Predicated region
    $region34: #{decoder_forward.3} parent=1 // pred_check
      _
    $region35: #{decoder_forward.3} parent=1 // pred_check_branch
      %824 = sbr.rel (0) target = $region37
    $region36: #{decoder_forward.3} parent=1 // pred_region
      _
    $region37: #{decoder_forward.3} parent=1 // pred_fallthru
      _
    // Predicated region
    $region38: #{decoder_forward.3} parent=1 // pred_check
      _
    $region39: #{decoder_forward.3} parent=1 // pred_check_branch
      %826 = sbr.rel (0) target = $region41
    $region40: #{decoder_forward.3} parent=1 // pred_region
      _
    $region41: #{decoder_forward.3} parent=1 // pred_fallthru
      _
    %827 = vsyncpa [#allocation3], 1

</llo_original>
